<compile_context>
chip_gen: v6e
topology: v6e:2x2x1
jax: 0.10.0
libtpu: 0.0.40
codegen_flags: <defaults>
</compile_context>

<pallas_src>
import functools

import jax
import jax.numpy as jnp
from jax.experimental import pallas as pl
from jax.experimental.pallas import tpu as pltpu


def _lstm_recur_kernel(xp_ref, h0_ref, c0_ref, wh_ref,
                       h_seq_ref, h_fin_ref, c_fin_ref,
                       h_sc, c_sc, *, t_block, num_units):
    """One grid step == `t_block` LSTM timesteps; only h @ Wh runs in here."""
    tb = pl.program_id(0)
    H = num_units

    @pl.when(tb == 0)
    def _():
        h_sc[...] = h0_ref[...].astype(jnp.float32)
        c_sc[...] = c0_ref[...].astype(jnp.float32)

    def step(s, carry):
        h, c = carry
        # Recurrent matmul only: bf16 operands, f32 accumulation (MXU-native).
        # (bf16 h feedback is fine at demo T; keep h operand f32 if accuracy at
        #  very long T matters.)
        gates = (jnp.dot(h.astype(jnp.bfloat16), wh_ref[...],
                         preferred_element_type=jnp.float32)
                 + xp_ref[s].astype(jnp.float32))        # x@Wx + bias, precomputed

        i = gates[:, 0 * H:1 * H]            # H is a multiple of 128 in the demo,
        j = gates[:, 1 * H:2 * H]            # so slices land on lane boundaries.
        f = gates[:, 2 * H:3 * H]            # (f_bias already folded into bias)
        o = gates[:, 3 * H:4 * H]

        new_c = c * jax.nn.sigmoid(f) + jax.nn.sigmoid(i) * jnp.tanh(j)
        new_h = jnp.tanh(new_c) * jax.nn.sigmoid(o)

        h_seq_ref[s] = new_h.astype(h_seq_ref.dtype)     # bf16 streamed output
        return new_h, new_c

    h_fin, c_fin = jax.lax.fori_loop(
        0, t_block, step, (h_sc[...], c_sc[...]), unroll=True)

    # Spill the carry to scratch only at block boundaries.
    h_sc[...] = h_fin
    c_sc[...] = c_fin

    @pl.when(tb == pl.num_programs(0) - 1)
    def _():
        h_fin_ref[...] = h_fin.astype(h_fin_ref.dtype)
        c_fin_ref[...] = c_fin.astype(c_fin_ref.dtype)


def _largest_divisor_leq(n, cap):
    for d in range(min(n, cap), 0, -1):
        if n % d == 0:
            return d
    return 1


@functools.partial(jax.jit, static_argnames=("f_bias", "t_block"))
def lstm_forward_sequence(x_seq, h0, c0, w_full, bias, *, f_bias=1.0,
                          t_block=None):
    """Run the LSTMCell recurrence over a whole sequence.

    Args:
      x_seq:  (T, B, input_size)
      h0, c0: (B, num_units) initial states
      w_full: (input_size + num_units, 4*num_units)
      bias:   (4*num_units,)
    Returns:
      (h_seq (T, B, H) bf16, h_final (B, H) f32, c_final (B, H) f32)
    """
    T, B, x_size = x_seq.shape
    _, H = h0.shape
    assert w_full.shape == (x_size + H, 4 * H)
    assert bias.shape == (4 * H,)

    if t_block is None:
        t_block = _largest_divisor_leq(T, 16)   # amortize grid-step overhead
    assert T % t_block == 0
    n_blocks = T // t_block

    # Fold the constant forget-gate bias in once (removes a per-step VPU add).
    bias_f = bias.astype(jnp.float32).at[2 * H:3 * H].add(jnp.float32(f_bias))

    # Split weights once; bf16 operands for the MXU.
    wx = w_full[:x_size, :].astype(jnp.bfloat16)
    wh = w_full[x_size:, :].astype(jnp.bfloat16)

    # Hoisted input projection: only h @ Wh is serially dependent, so batch the
    # x projection over ALL timesteps in one big MXU matmul (M = T*B >> B).
    x_proj = jnp.dot(x_seq.reshape(T * B, x_size).astype(jnp.bfloat16), wx,
                     preferred_element_type=jnp.float32) + bias_f
    x_proj = x_proj.reshape(T, B, 4 * H)        # f32 stream (see header note)

    kernel = functools.partial(_lstm_recur_kernel, t_block=t_block, num_units=H)

    h_seq, h_fin, c_fin = pl.pallas_call(
        kernel,
        out_shape=(
            jax.ShapeDtypeStruct((T, B, H), jnp.bfloat16),   # per-step h (streamed)
            jax.ShapeDtypeStruct((B, H), jnp.float32),       # final h (resident)
            jax.ShapeDtypeStruct((B, H), jnp.float32),       # final c (resident)
        ),
        grid_spec=pltpu.PrefetchScalarGridSpec(
            num_scalar_prefetch=0,
            grid=(n_blocks,),
            in_specs=[
                pl.BlockSpec((t_block, B, 4 * H), lambda tb: (tb, 0, 0)),  # x_proj stream
                pl.BlockSpec((B, H), lambda tb: (0, 0)),                   # h0 (resident)
                pl.BlockSpec((B, H), lambda tb: (0, 0)),                   # c0 (resident)
                pl.BlockSpec((H, 4 * H), lambda tb: (0, 0)),               # Wh (resident)
            ],
            out_specs=(
                pl.BlockSpec((t_block, B, H), lambda tb: (tb, 0, 0)),      # h_seq stream
                pl.BlockSpec((B, H), lambda tb: (0, 0)),                   # final h
                pl.BlockSpec((B, H), lambda tb: (0, 0)),                   # final c
            ),
            scratch_shapes=[
                pltpu.VMEM((B, H), jnp.float32),   # h carry across time blocks
                pltpu.VMEM((B, H), jnp.float32),   # c carry across time blocks
            ],
        ),
        compiler_params=pltpu.CompilerParams(
            dimension_semantics=("arbitrary",),    # recurrent time axis
        ),
    )(x_proj, h0.astype(jnp.float32), c0.astype(jnp.float32), wh)

    return h_seq, h_fin, c_fin


def orthogonal_init(key, shape, scale=1.0, dtype=jnp.float32):
    """Deterministic stand-in for helper.orthogonal_initializer."""
    rows, cols = shape
    n = max(rows, cols)
    a = jax.random.normal(key, (n, n), dtype=jnp.float32)
    q, r = jnp.linalg.qr(a)
    q = q * jnp.sign(jnp.diag(r))[None, :]
    return (scale * q[:rows, :cols]).astype(dtype)


def reference_sequence(x_seq, h0, c0, w_full, bias, f_bias=1.0):
    """Pure-JAX f32 reference matching the PyTorch forward, scanned over time."""
    def step(carry, x):
        h, c = carry
        concat = jnp.concatenate([x, h], axis=1) @ w_full + bias
        i, j, f, o = jnp.split(concat, 4, axis=1)
        new_c = c * jax.nn.sigmoid(f + f_bias) + jax.nn.sigmoid(i) * jnp.tanh(j)
        new_h = jnp.tanh(new_c) * jax.nn.sigmoid(o)
        return (new_h, new_c), new_h

    (h_f, c_f), h_seq = jax.lax.scan(step, (h0, c0), x_seq)
    return h_seq, h_f, c_f


if __name__ == "__main__":
    T = 8            # sequence length (blocked into the grid / in-kernel loop)
    B = 8            # batch
    X_SIZE = 64      # input_size
    H_SIZE = 128     # num_units
    F_BIAS = 1.0
    dtype = jnp.float32

    key = jax.random.PRNGKey(0)
    kw, kx, kh, kc = jax.random.split(key, 4)

    w_full = orthogonal_init(kw, (X_SIZE + H_SIZE, 4 * H_SIZE), scale=1.0, dtype=dtype)
    bias = jnp.zeros((4 * H_SIZE,), dtype=dtype)

    x_seq = jax.random.normal(kx, (T, B, X_SIZE), dtype=dtype)
    # states after reset() would be zeros; use small random states to exercise the math
    h0 = jax.random.normal(kh, (B, H_SIZE), dtype=dtype) * 0.1
    c0 = jax.random.normal(kc, (B, H_SIZE), dtype=dtype) * 0.1

    h_seq, h_last, c_last = lstm_forward_sequence(
        x_seq, h0, c0, w_full, bias, f_bias=F_BIAS)
    jax.block_until_ready((h_seq, h_last, c_last))

    ref_h_seq, ref_h, ref_c = reference_sequence(x_seq, h0, c0, w_full, bias, f_bias=F_BIAS)

    # Kernel matmuls run with bf16 operands (f32 accumulate) and h_seq is stored
    # in bf16, so compare against the f32 reference with a bf16-appropriate tol.
    assert jnp.allclose(h_seq.astype(jnp.float32), ref_h_seq, atol=5e-2, rtol=5e-2), "h_seq mismatch"
    assert jnp.allclose(h_last, ref_h, atol=5e-2, rtol=5e-2), "h_final mismatch"
    assert jnp.allclose(c_last, ref_c, atol=5e-2, rtol=5e-2), "c_final mismatch"

    print("KERNEL_OK")
</pallas_src>

<mosaic_0001>
module attributes {stable_mosaic.version = 11 : i64} {
  func.func @_lstm_recur_kernel(%arg0: i32, %arg1: memref<8x8x512xf32, #tpu.memory_space<vmem>>, %arg2: memref<8x128xf32, #tpu.memory_space<vmem>>, %arg3: memref<8x128xf32, #tpu.memory_space<vmem>>, %arg4: memref<128x512xbf16, #tpu.memory_space<vmem>>, %arg5: memref<8x8x128xbf16, #tpu.memory_space<vmem>>, %arg6: memref<8x128xf32, #tpu.memory_space<vmem>>, %arg7: memref<8x128xf32, #tpu.memory_space<vmem>>, %arg8: memref<8x128xf32, #tpu.memory_space<vmem>>, %arg9: memref<8x128xf32, #tpu.memory_space<vmem>>) attributes {dimension_semantics = [#tpu.dimension_semantics<arbitrary>], iteration_bounds = array<i64: 1>, scalar_prefetch = 0 : i64, scratch_operands = 2 : i64, tpu.core_type = #tpu.core_type<tc>, window_params = [{transform_indices = @transform_0, window_bounds = array<i64: 8, 8, 512>}, {pipeline_mode = #tpu.pipeline_mode<synchronous>, transform_indices = @transform_1, window_bounds = array<i64: 8, 128>}, {pipeline_mode = #tpu.pipeline_mode<synchronous>, transform_indices = @transform_2, window_bounds = array<i64: 8, 128>}, {pipeline_mode = #tpu.pipeline_mode<synchronous>, transform_indices = @transform_3, window_bounds = array<i64: 128, 512>}, {transform_indices = @transform_4, window_bounds = array<i64: 8, 8, 128>}, {pipeline_mode = #tpu.pipeline_mode<synchronous>, transform_indices = @transform_5, window_bounds = array<i64: 8, 128>}, {pipeline_mode = #tpu.pipeline_mode<synchronous>, transform_indices = @transform_6, window_bounds = array<i64: 8, 128>}]} {
    %c0_i32 = arith.constant 0 : i32
    %0 = arith.cmpi eq, %arg0, %c0_i32 : i32
    %1 = arith.extui %0 : i1 to i32
    %c0_i32_0 = arith.constant 0 : i32
    %2 = arith.cmpi ne, %1, %c0_i32_0 : i32
    scf.if %2 {
      %c0_90 = arith.constant 0 : index
      %c0_91 = arith.constant 0 : index
      %306 = vector.load %arg2[%c0_90, %c0_91] : memref<8x128xf32, #tpu.memory_space<vmem>>, vector<8x128xf32>
      %c0_92 = arith.constant 0 : index
      %c0_93 = arith.constant 0 : index
      %307 = vector.load %arg8[%c0_92, %c0_93] : memref<8x128xf32, #tpu.memory_space<vmem>>, vector<8x128xf32>
      tpu.vector_store %arg8[%c0_92, %c0_93], %306 {strides = array<i32>} : memref<8x128xf32, #tpu.memory_space<vmem>>, vector<8x128xf32>,
      %c0_94 = arith.constant 0 : index
      %c0_95 = arith.constant 0 : index
      %308 = vector.load %arg3[%c0_94, %c0_95] : memref<8x128xf32, #tpu.memory_space<vmem>>, vector<8x128xf32>
      %c0_96 = arith.constant 0 : index
      %c0_97 = arith.constant 0 : index
      %309 = vector.load %arg9[%c0_96, %c0_97] : memref<8x128xf32, #tpu.memory_space<vmem>>, vector<8x128xf32>
      tpu.vector_store %arg9[%c0_96, %c0_97], %308 {strides = array<i32>} : memref<8x128xf32, #tpu.memory_space<vmem>>, vector<8x128xf32>,
    } else {
    }
    %c0 = arith.constant 0 : index
    %c0_1 = arith.constant 0 : index
    %3 = vector.load %arg8[%c0, %c0_1] : memref<8x128xf32, #tpu.memory_space<vmem>>, vector<8x128xf32>
    %c0_2 = arith.constant 0 : index
    %c0_3 = arith.constant 0 : index
    %4 = vector.load %arg9[%c0_2, %c0_3] : memref<8x128xf32, #tpu.memory_space<vmem>>, vector<8x128xf32>
    %c0_i32_4 = arith.constant 0 : i32
    %5 = arith.truncf %3 : vector<8x128xf32> to vector<8x128xbf16>
    %c0_5 = arith.constant 0 : index
    %c0_6 = arith.constant 0 : index
    %6 = vector.load %arg4[%c0_5, %c0_6] : memref<128x512xbf16, #tpu.memory_space<vmem>>, vector<128x512xbf16>
    %cst = arith.constant dense<0.000000e+00> : vector<8x512xf32>
    %7 = tpu.matmul %5, %6, %cst {dimension_numbers = #tpu.dot_dimension_numbers<[1], [0], [0], [1], [0, 0, 1, 1], [], []>} : vector<8x128xbf16>, vector<128x512xbf16>, vector<8x512xf32> -> vector<8x512xf32>
    %8 = arith.index_cast %c0_i32_4 : i32 to index
    %c0_7 = arith.constant 0 : index
    %c0_8 = arith.constant 0 : index
    %9 = vector.load %arg1[%8, %c0_7, %c0_8] : memref<8x8x512xf32, #tpu.memory_space<vmem>>, vector<1x8x512xf32>
    %10 = vector.shape_cast %9 : vector<1x8x512xf32> to vector<8x512xf32>
    %11 = arith.addf %7, %10 : vector<8x512xf32>
    %12 = vector.extract_strided_slice %11 {offsets = [0, 0], sizes = [8, 128], strides = [1, 1]} : vector<8x512xf32> to vector<8x128xf32>
    %13 = vector.extract_strided_slice %11 {offsets = [0, 128], sizes = [8, 128], strides = [1, 1]} : vector<8x512xf32> to vector<8x128xf32>
    %14 = vector.extract_strided_slice %11 {offsets = [0, 256], sizes = [8, 128], strides = [1, 1]} : vector<8x512xf32> to vector<8x128xf32>
    %15 = vector.extract_strided_slice %11 {offsets = [0, 384], sizes = [8, 128], strides = [1, 1]} : vector<8x512xf32> to vector<8x128xf32>
    %16 = arith.negf %14 : vector<8x128xf32>
    %17 = math.exp %16 : vector<8x128xf32>
    %cst_9 = arith.constant 1.000000e+00 : f32
    %18 = vector.broadcast %cst_9 : f32 to vector<8x128xf32>
    %19 = arith.addf %18, %17 : vector<8x128xf32>
    %20 = arith.divf %18, %19 : vector<8x128xf32>
    %21 = arith.mulf %4, %20 : vector<8x128xf32>
    %22 = arith.negf %12 : vector<8x128xf32>
    %23 = math.exp %22 : vector<8x128xf32>
    %cst_10 = arith.constant 1.000000e+00 : f32
    %24 = vector.broadcast %cst_10 : f32 to vector<8x128xf32>
    %25 = arith.addf %24, %23 : vector<8x128xf32>
    %26 = arith.divf %24, %25 : vector<8x128xf32>
    %27 = math.tanh %13 : vector<8x128xf32>
    %28 = arith.mulf %26, %27 : vector<8x128xf32>
    %29 = arith.addf %21, %28 : vector<8x128xf32>
    %30 = math.tanh %29 : vector<8x128xf32>
    %31 = arith.negf %15 : vector<8x128xf32>
    %32 = math.exp %31 : vector<8x128xf32>
    %cst_11 = arith.constant 1.000000e+00 : f32
    %33 = vector.broadcast %cst_11 : f32 to vector<8x128xf32>
    %34 = arith.addf %33, %32 : vector<8x128xf32>
    %35 = arith.divf %33, %34 : vector<8x128xf32>
    %36 = arith.mulf %30, %35 : vector<8x128xf32>
    %37 = arith.truncf %36 : vector<8x128xf32> to vector<8x128xbf16>
    %38 = arith.index_cast %c0_i32_4 : i32 to index
    %c0_12 = arith.constant 0 : index
    %c0_13 = arith.constant 0 : index
    %39 = vector.load %arg5[%38, %c0_12, %c0_13] : memref<8x8x128xbf16, #tpu.memory_space<vmem>>, vector<1x8x128xbf16>
    %40 = vector.shape_cast %39 : vector<1x8x128xbf16> to vector<8x128xbf16>
    %41 = vector.shape_cast %37 : vector<8x128xbf16> to vector<1x8x128xbf16>
    tpu.vector_store %arg5[%38, %c0_12, %c0_13], %41 {strides = array<i32>} : memref<8x8x128xbf16, #tpu.memory_space<vmem>>, vector<1x8x128xbf16>,
    %c1_i32 = arith.constant 1 : i32
    %42 = arith.truncf %36 : vector<8x128xf32> to vector<8x128xbf16>
    %c0_14 = arith.constant 0 : index
    %c0_15 = arith.constant 0 : index
    %43 = vector.load %arg4[%c0_14, %c0_15] : memref<128x512xbf16, #tpu.memory_space<vmem>>, vector<128x512xbf16>
    %cst_16 = arith.constant dense<0.000000e+00> : vector<8x512xf32>
    %44 = tpu.matmul %42, %43, %cst_16 {dimension_numbers = #tpu.dot_dimension_numbers<[1], [0], [0], [1], [0, 0, 1, 1], [], []>} : vector<8x128xbf16>, vector<128x512xbf16>, vector<8x512xf32> -> vector<8x512xf32>
    %45 = arith.index_cast %c1_i32 : i32 to index
    %c0_17 = arith.constant 0 : index
    %c0_18 = arith.constant 0 : index
    %46 = vector.load %arg1[%45, %c0_17, %c0_18] : memref<8x8x512xf32, #tpu.memory_space<vmem>>, vector<1x8x512xf32>
    %47 = vector.shape_cast %46 : vector<1x8x512xf32> to vector<8x512xf32>
    %48 = arith.addf %44, %47 : vector<8x512xf32>
    %49 = vector.extract_strided_slice %48 {offsets = [0, 0], sizes = [8, 128], strides = [1, 1]} : vector<8x512xf32> to vector<8x128xf32>
    %50 = vector.extract_strided_slice %48 {offsets = [0, 128], sizes = [8, 128], strides = [1, 1]} : vector<8x512xf32> to vector<8x128xf32>
    %51 = vector.extract_strided_slice %48 {offsets = [0, 256], sizes = [8, 128], strides = [1, 1]} : vector<8x512xf32> to vector<8x128xf32>
    %52 = vector.extract_strided_slice %48 {offsets = [0, 384], sizes = [8, 128], strides = [1, 1]} : vector<8x512xf32> to vector<8x128xf32>
    %53 = arith.negf %51 : vector<8x128xf32>
    %54 = math.exp %53 : vector<8x128xf32>
    %cst_19 = arith.constant 1.000000e+00 : f32
    %55 = vector.broadcast %cst_19 : f32 to vector<8x128xf32>
    %56 = arith.addf %55, %54 : vector<8x128xf32>
    %57 = arith.divf %55, %56 : vector<8x128xf32>
    %58 = arith.mulf %29, %57 : vector<8x128xf32>
    %59 = arith.negf %49 : vector<8x128xf32>
    %60 = math.exp %59 : vector<8x128xf32>
    %cst_20 = arith.constant 1.000000e+00 : f32
    %61 = vector.broadcast %cst_20 : f32 to vector<8x128xf32>
    %62 = arith.addf %61, %60 : vector<8x128xf32>
    %63 = arith.divf %61, %62 : vector<8x128xf32>
    %64 = math.tanh %50 : vector<8x128xf32>
    %65 = arith.mulf %63, %64 : vector<8x128xf32>
    %66 = arith.addf %58, %65 : vector<8x128xf32>
    %67 = math.tanh %66 : vector<8x128xf32>
    %68 = arith.negf %52 : vector<8x128xf32>
    %69 = math.exp %68 : vector<8x128xf32>
    %cst_21 = arith.constant 1.000000e+00 : f32
    %70 = vector.broadcast %cst_21 : f32 to vector<8x128xf32>
    %71 = arith.addf %70, %69 : vector<8x128xf32>
    %72 = arith.divf %70, %71 : vector<8x128xf32>
    %73 = arith.mulf %67, %72 : vector<8x128xf32>
    %74 = arith.truncf %73 : vector<8x128xf32> to vector<8x128xbf16>
    %75 = arith.index_cast %c1_i32 : i32 to index
    %c0_22 = arith.constant 0 : index
    %c0_23 = arith.constant 0 : index
    %76 = vector.load %arg5[%75, %c0_22, %c0_23] : memref<8x8x128xbf16, #tpu.memory_space<vmem>>, vector<1x8x128xbf16>
    %77 = vector.shape_cast %76 : vector<1x8x128xbf16> to vector<8x128xbf16>
    %78 = vector.shape_cast %74 : vector<8x128xbf16> to vector<1x8x128xbf16>
    tpu.vector_store %arg5[%75, %c0_22, %c0_23], %78 {strides = array<i32>} : memref<8x8x128xbf16, #tpu.memory_space<vmem>>, vector<1x8x128xbf16>,
    %c2_i32 = arith.constant 2 : i32
    %79 = arith.truncf %73 : vector<8x128xf32> to vector<8x128xbf16>
    %c0_24 = arith.constant 0 : index
    %c0_25 = arith.constant 0 : index
    %80 = vector.load %arg4[%c0_24, %c0_25] : memref<128x512xbf16, #tpu.memory_space<vmem>>, vector<128x512xbf16>
    %cst_26 = arith.constant dense<0.000000e+00> : vector<8x512xf32>
    %81 = tpu.matmul %79, %80, %cst_26 {dimension_numbers = #tpu.dot_dimension_numbers<[1], [0], [0], [1], [0, 0, 1, 1], [], []>} : vector<8x128xbf16>, vector<128x512xbf16>, vector<8x512xf32> -> vector<8x512xf32>
    %82 = arith.index_cast %c2_i32 : i32 to index
    %c0_27 = arith.constant 0 : index
    %c0_28 = arith.constant 0 : index
    %83 = vector.load %arg1[%82, %c0_27, %c0_28] : memref<8x8x512xf32, #tpu.memory_space<vmem>>, vector<1x8x512xf32>
    %84 = vector.shape_cast %83 : vector<1x8x512xf32> to vector<8x512xf32>
    %85 = arith.addf %81, %84 : vector<8x512xf32>
    %86 = vector.extract_strided_slice %85 {offsets = [0, 0], sizes = [8, 128], strides = [1, 1]} : vector<8x512xf32> to vector<8x128xf32>
    %87 = vector.extract_strided_slice %85 {offsets = [0, 128], sizes = [8, 128], strides = [1, 1]} : vector<8x512xf32> to vector<8x128xf32>
    %88 = vector.extract_strided_slice %85 {offsets = [0, 256], sizes = [8, 128], strides = [1, 1]} : vector<8x512xf32> to vector<8x128xf32>
    %89 = vector.extract_strided_slice %85 {offsets = [0, 384], sizes = [8, 128], strides = [1, 1]} : vector<8x512xf32> to vector<8x128xf32>
    %90 = arith.negf %88 : vector<8x128xf32>
    %91 = math.exp %90 : vector<8x128xf32>
    %cst_29 = arith.constant 1.000000e+00 : f32
    %92 = vector.broadcast %cst_29 : f32 to vector<8x128xf32>
    %93 = arith.addf %92, %91 : vector<8x128xf32>
    %94 = arith.divf %92, %93 : vector<8x128xf32>
    %95 = arith.mulf %66, %94 : vector<8x128xf32>
    %96 = arith.negf %86 : vector<8x128xf32>
    %97 = math.exp %96 : vector<8x128xf32>
    %cst_30 = arith.constant 1.000000e+00 : f32
    %98 = vector.broadcast %cst_30 : f32 to vector<8x128xf32>
    %99 = arith.addf %98, %97 : vector<8x128xf32>
    %100 = arith.divf %98, %99 : vector<8x128xf32>
    %101 = math.tanh %87 : vector<8x128xf32>
    %102 = arith.mulf %100, %101 : vector<8x128xf32>
    %103 = arith.addf %95, %102 : vector<8x128xf32>
    %104 = math.tanh %103 : vector<8x128xf32>
    %105 = arith.negf %89 : vector<8x128xf32>
    %106 = math.exp %105 : vector<8x128xf32>
    %cst_31 = arith.constant 1.000000e+00 : f32
    %107 = vector.broadcast %cst_31 : f32 to vector<8x128xf32>
    %108 = arith.addf %107, %106 : vector<8x128xf32>
    %109 = arith.divf %107, %108 : vector<8x128xf32>
    %110 = arith.mulf %104, %109 : vector<8x128xf32>
    %111 = arith.truncf %110 : vector<8x128xf32> to vector<8x128xbf16>
    %112 = arith.index_cast %c2_i32 : i32 to index
    %c0_32 = arith.constant 0 : index
    %c0_33 = arith.constant 0 : index
    %113 = vector.load %arg5[%112, %c0_32, %c0_33] : memref<8x8x128xbf16, #tpu.memory_space<vmem>>, vector<1x8x128xbf16>
    %114 = vector.shape_cast %113 : vector<1x8x128xbf16> to vector<8x128xbf16>
    %115 = vector.shape_cast %111 : vector<8x128xbf16> to vector<1x8x128xbf16>
    tpu.vector_store %arg5[%112, %c0_32, %c0_33], %115 {strides = array<i32>} : memref<8x8x128xbf16, #tpu.memory_space<vmem>>, vector<1x8x128xbf16>,
    %c3_i32 = arith.constant 3 : i32
    %116 = arith.truncf %110 : vector<8x128xf32> to vector<8x128xbf16>
    %c0_34 = arith.constant 0 : index
    %c0_35 = arith.constant 0 : index
    %117 = vector.load %arg4[%c0_34, %c0_35] : memref<128x512xbf16, #tpu.memory_space<vmem>>, vector<128x512xbf16>
    %cst_36 = arith.constant dense<0.000000e+00> : vector<8x512xf32>
    %118 = tpu.matmul %116, %117, %cst_36 {dimension_numbers = #tpu.dot_dimension_numbers<[1], [0], [0], [1], [0, 0, 1, 1], [], []>} : vector<8x128xbf16>, vector<128x512xbf16>, vector<8x512xf32> -> vector<8x512xf32>
    %119 = arith.index_cast %c3_i32 : i32 to index
    %c0_37 = arith.constant 0 : index
    %c0_38 = arith.constant 0 : index
    %120 = vector.load %arg1[%119, %c0_37, %c0_38] : memref<8x8x512xf32, #tpu.memory_space<vmem>>, vector<1x8x512xf32>
    %121 = vector.shape_cast %120 : vector<1x8x512xf32> to vector<8x512xf32>
    %122 = arith.addf %118, %121 : vector<8x512xf32>
    %123 = vector.extract_strided_slice %122 {offsets = [0, 0], sizes = [8, 128], strides = [1, 1]} : vector<8x512xf32> to vector<8x128xf32>
    %124 = vector.extract_strided_slice %122 {offsets = [0, 128], sizes = [8, 128], strides = [1, 1]} : vector<8x512xf32> to vector<8x128xf32>
    %125 = vector.extract_strided_slice %122 {offsets = [0, 256], sizes = [8, 128], strides = [1, 1]} : vector<8x512xf32> to vector<8x128xf32>
    %126 = vector.extract_strided_slice %122 {offsets = [0, 384], sizes = [8, 128], strides = [1, 1]} : vector<8x512xf32> to vector<8x128xf32>
    %127 = arith.negf %125 : vector<8x128xf32>
    %128 = math.exp %127 : vector<8x128xf32>
    %cst_39 = arith.constant 1.000000e+00 : f32
    %129 = vector.broadcast %cst_39 : f32 to vector<8x128xf32>
    %130 = arith.addf %129, %128 : vector<8x128xf32>
    %131 = arith.divf %129, %130 : vector<8x128xf32>
    %132 = arith.mulf %103, %131 : vector<8x128xf32>
    %133 = arith.negf %123 : vector<8x128xf32>
    %134 = math.exp %133 : vector<8x128xf32>
    %cst_40 = arith.constant 1.000000e+00 : f32
    %135 = vector.broadcast %cst_40 : f32 to vector<8x128xf32>
    %136 = arith.addf %135, %134 : vector<8x128xf32>
    %137 = arith.divf %135, %136 : vector<8x128xf32>
    %138 = math.tanh %124 : vector<8x128xf32>
    %139 = arith.mulf %137, %138 : vector<8x128xf32>
    %140 = arith.addf %132, %139 : vector<8x128xf32>
    %141 = math.tanh %140 : vector<8x128xf32>
    %142 = arith.negf %126 : vector<8x128xf32>
    %143 = math.exp %142 : vector<8x128xf32>
    %cst_41 = arith.constant 1.000000e+00 : f32
    %144 = vector.broadcast %cst_41 : f32 to vector<8x128xf32>
    %145 = arith.addf %144, %143 : vector<8x128xf32>
    %146 = arith.divf %144, %145 : vector<8x128xf32>
    %147 = arith.mulf %141, %146 : vector<8x128xf32>
    %148 = arith.truncf %147 : vector<8x128xf32> to vector<8x128xbf16>
    %149 = arith.index_cast %c3_i32 : i32 to index
    %c0_42 = arith.constant 0 : index
    %c0_43 = arith.constant 0 : index
    %150 = vector.load %arg5[%149, %c0_42, %c0_43] : memref<8x8x128xbf16, #tpu.memory_space<vmem>>, vector<1x8x128xbf16>
    %151 = vector.shape_cast %150 : vector<1x8x128xbf16> to vector<8x128xbf16>
    %152 = vector.shape_cast %148 : vector<8x128xbf16> to vector<1x8x128xbf16>
    tpu.vector_store %arg5[%149, %c0_42, %c0_43], %152 {strides = array<i32>} : memref<8x8x128xbf16, #tpu.memory_space<vmem>>, vector<1x8x128xbf16>,
    %c4_i32 = arith.constant 4 : i32
    %153 = arith.truncf %147 : vector<8x128xf32> to vector<8x128xbf16>
    %c0_44 = arith.constant 0 : index
    %c0_45 = arith.constant 0 : index
    %154 = vector.load %arg4[%c0_44, %c0_45] : memref<128x512xbf16, #tpu.memory_space<vmem>>, vector<128x512xbf16>
    %cst_46 = arith.constant dense<0.000000e+00> : vector<8x512xf32>
    %155 = tpu.matmul %153, %154, %cst_46 {dimension_numbers = #tpu.dot_dimension_numbers<[1], [0], [0], [1], [0, 0, 1, 1], [], []>} : vector<8x128xbf16>, vector<128x512xbf16>, vector<8x512xf32> -> vector<8x512xf32>
    %156 = arith.index_cast %c4_i32 : i32 to index
    %c0_47 = arith.constant 0 : index
    %c0_48 = arith.constant 0 : index
    %157 = vector.load %arg1[%156, %c0_47, %c0_48] : memref<8x8x512xf32, #tpu.memory_space<vmem>>, vector<1x8x512xf32>
    %158 = vector.shape_cast %157 : vector<1x8x512xf32> to vector<8x512xf32>
    %159 = arith.addf %155, %158 : vector<8x512xf32>
    %160 = vector.extract_strided_slice %159 {offsets = [0, 0], sizes = [8, 128], strides = [1, 1]} : vector<8x512xf32> to vector<8x128xf32>
    %161 = vector.extract_strided_slice %159 {offsets = [0, 128], sizes = [8, 128], strides = [1, 1]} : vector<8x512xf32> to vector<8x128xf32>
    %162 = vector.extract_strided_slice %159 {offsets = [0, 256], sizes = [8, 128], strides = [1, 1]} : vector<8x512xf32> to vector<8x128xf32>
    %163 = vector.extract_strided_slice %159 {offsets = [0, 384], sizes = [8, 128], strides = [1, 1]} : vector<8x512xf32> to vector<8x128xf32>
    %164 = arith.negf %162 : vector<8x128xf32>
    %165 = math.exp %164 : vector<8x128xf32>
    %cst_49 = arith.constant 1.000000e+00 : f32
    %166 = vector.broadcast %cst_49 : f32 to vector<8x128xf32>
    %167 = arith.addf %166, %165 : vector<8x128xf32>
    %168 = arith.divf %166, %167 : vector<8x128xf32>
    %169 = arith.mulf %140, %168 : vector<8x128xf32>
    %170 = arith.negf %160 : vector<8x128xf32>
    %171 = math.exp %170 : vector<8x128xf32>
    %cst_50 = arith.constant 1.000000e+00 : f32
    %172 = vector.broadcast %cst_50 : f32 to vector<8x128xf32>
    %173 = arith.addf %172, %171 : vector<8x128xf32>
    %174 = arith.divf %172, %173 : vector<8x128xf32>
    %175 = math.tanh %161 : vector<8x128xf32>
    %176 = arith.mulf %174, %175 : vector<8x128xf32>
    %177 = arith.addf %169, %176 : vector<8x128xf32>
    %178 = math.tanh %177 : vector<8x128xf32>
    %179 = arith.negf %163 : vector<8x128xf32>
    %180 = math.exp %179 : vector<8x128xf32>
    %cst_51 = arith.constant 1.000000e+00 : f32
    %181 = vector.broadcast %cst_51 : f32 to vector<8x128xf32>
    %182 = arith.addf %181, %180 : vector<8x128xf32>
    %183 = arith.divf %181, %182 : vector<8x128xf32>
    %184 = arith.mulf %178, %183 : vector<8x128xf32>
    %185 = arith.truncf %184 : vector<8x128xf32> to vector<8x128xbf16>
    %186 = arith.index_cast %c4_i32 : i32 to index
    %c0_52 = arith.constant 0 : index
    %c0_53 = arith.constant 0 : index
    %187 = vector.load %arg5[%186, %c0_52, %c0_53] : memref<8x8x128xbf16, #tpu.memory_space<vmem>>, vector<1x8x128xbf16>
    %188 = vector.shape_cast %187 : vector<1x8x128xbf16> to vector<8x128xbf16>
    %189 = vector.shape_cast %185 : vector<8x128xbf16> to vector<1x8x128xbf16>
    tpu.vector_store %arg5[%186, %c0_52, %c0_53], %189 {strides = array<i32>} : memref<8x8x128xbf16, #tpu.memory_space<vmem>>, vector<1x8x128xbf16>,
    %c5_i32 = arith.constant 5 : i32
    %190 = arith.truncf %184 : vector<8x128xf32> to vector<8x128xbf16>
    %c0_54 = arith.constant 0 : index
    %c0_55 = arith.constant 0 : index
    %191 = vector.load %arg4[%c0_54, %c0_55] : memref<128x512xbf16, #tpu.memory_space<vmem>>, vector<128x512xbf16>
    %cst_56 = arith.constant dense<0.000000e+00> : vector<8x512xf32>
    %192 = tpu.matmul %190, %191, %cst_56 {dimension_numbers = #tpu.dot_dimension_numbers<[1], [0], [0], [1], [0, 0, 1, 1], [], []>} : vector<8x128xbf16>, vector<128x512xbf16>, vector<8x512xf32> -> vector<8x512xf32>
    %193 = arith.index_cast %c5_i32 : i32 to index
    %c0_57 = arith.constant 0 : index
    %c0_58 = arith.constant 0 : index
    %194 = vector.load %arg1[%193, %c0_57, %c0_58] : memref<8x8x512xf32, #tpu.memory_space<vmem>>, vector<1x8x512xf32>
    %195 = vector.shape_cast %194 : vector<1x8x512xf32> to vector<8x512xf32>
    %196 = arith.addf %192, %195 : vector<8x512xf32>
    %197 = vector.extract_strided_slice %196 {offsets = [0, 0], sizes = [8, 128], strides = [1, 1]} : vector<8x512xf32> to vector<8x128xf32>
    %198 = vector.extract_strided_slice %196 {offsets = [0, 128], sizes = [8, 128], strides = [1, 1]} : vector<8x512xf32> to vector<8x128xf32>
    %199 = vector.extract_strided_slice %196 {offsets = [0, 256], sizes = [8, 128], strides = [1, 1]} : vector<8x512xf32> to vector<8x128xf32>
    %200 = vector.extract_strided_slice %196 {offsets = [0, 384], sizes = [8, 128], strides = [1, 1]} : vector<8x512xf32> to vector<8x128xf32>
    %201 = arith.negf %199 : vector<8x128xf32>
    %202 = math.exp %201 : vector<8x128xf32>
    %cst_59 = arith.constant 1.000000e+00 : f32
    %203 = vector.broadcast %cst_59 : f32 to vector<8x128xf32>
    %204 = arith.addf %203, %202 : vector<8x128xf32>
    %205 = arith.divf %203, %204 : vector<8x128xf32>
    %206 = arith.mulf %177, %205 : vector<8x128xf32>
    %207 = arith.negf %197 : vector<8x128xf32>
    %208 = math.exp %207 : vector<8x128xf32>
    %cst_60 = arith.constant 1.000000e+00 : f32
    %209 = vector.broadcast %cst_60 : f32 to vector<8x128xf32>
    %210 = arith.addf %209, %208 : vector<8x128xf32>
    %211 = arith.divf %209, %210 : vector<8x128xf32>
    %212 = math.tanh %198 : vector<8x128xf32>
    %213 = arith.mulf %211, %212 : vector<8x128xf32>
    %214 = arith.addf %206, %213 : vector<8x128xf32>
    %215 = math.tanh %214 : vector<8x128xf32>
    %216 = arith.negf %200 : vector<8x128xf32>
    %217 = math.exp %216 : vector<8x128xf32>
    %cst_61 = arith.constant 1.000000e+00 : f32
    %218 = vector.broadcast %cst_61 : f32 to vector<8x128xf32>
    %219 = arith.addf %218, %217 : vector<8x128xf32>
    %220 = arith.divf %218, %219 : vector<8x128xf32>
    %221 = arith.mulf %215, %220 : vector<8x128xf32>
    %222 = arith.truncf %221 : vector<8x128xf32> to vector<8x128xbf16>
    %223 = arith.index_cast %c5_i32 : i32 to index
    %c0_62 = arith.constant 0 : index
    %c0_63 = arith.constant 0 : index
    %224 = vector.load %arg5[%223, %c0_62, %c0_63] : memref<8x8x128xbf16, #tpu.memory_space<vmem>>, vector<1x8x128xbf16>
    %225 = vector.shape_cast %224 : vector<1x8x128xbf16> to vector<8x128xbf16>
    %226 = vector.shape_cast %222 : vector<8x128xbf16> to vector<1x8x128xbf16>
    tpu.vector_store %arg5[%223, %c0_62, %c0_63], %226 {strides = array<i32>} : memref<8x8x128xbf16, #tpu.memory_space<vmem>>, vector<1x8x128xbf16>,
    %c6_i32 = arith.constant 6 : i32
    %227 = arith.truncf %221 : vector<8x128xf32> to vector<8x128xbf16>
    %c0_64 = arith.constant 0 : index
    %c0_65 = arith.constant 0 : index
    %228 = vector.load %arg4[%c0_64, %c0_65] : memref<128x512xbf16, #tpu.memory_space<vmem>>, vector<128x512xbf16>
    %cst_66 = arith.constant dense<0.000000e+00> : vector<8x512xf32>
    %229 = tpu.matmul %227, %228, %cst_66 {dimension_numbers = #tpu.dot_dimension_numbers<[1], [0], [0], [1], [0, 0, 1, 1], [], []>} : vector<8x128xbf16>, vector<128x512xbf16>, vector<8x512xf32> -> vector<8x512xf32>
    %230 = arith.index_cast %c6_i32 : i32 to index
    %c0_67 = arith.constant 0 : index
    %c0_68 = arith.constant 0 : index
    %231 = vector.load %arg1[%230, %c0_67, %c0_68] : memref<8x8x512xf32, #tpu.memory_space<vmem>>, vector<1x8x512xf32>
    %232 = vector.shape_cast %231 : vector<1x8x512xf32> to vector<8x512xf32>
    %233 = arith.addf %229, %232 : vector<8x512xf32>
    %234 = vector.extract_strided_slice %233 {offsets = [0, 0], sizes = [8, 128], strides = [1, 1]} : vector<8x512xf32> to vector<8x128xf32>
    %235 = vector.extract_strided_slice %233 {offsets = [0, 128], sizes = [8, 128], strides = [1, 1]} : vector<8x512xf32> to vector<8x128xf32>
    %236 = vector.extract_strided_slice %233 {offsets = [0, 256], sizes = [8, 128], strides = [1, 1]} : vector<8x512xf32> to vector<8x128xf32>
    %237 = vector.extract_strided_slice %233 {offsets = [0, 384], sizes = [8, 128], strides = [1, 1]} : vector<8x512xf32> to vector<8x128xf32>
    %238 = arith.negf %236 : vector<8x128xf32>
    %239 = math.exp %238 : vector<8x128xf32>
    %cst_69 = arith.constant 1.000000e+00 : f32
    %240 = vector.broadcast %cst_69 : f32 to vector<8x128xf32>
    %241 = arith.addf %240, %239 : vector<8x128xf32>
    %242 = arith.divf %240, %241 : vector<8x128xf32>
    %243 = arith.mulf %214, %242 : vector<8x128xf32>
    %244 = arith.negf %234 : vector<8x128xf32>
    %245 = math.exp %244 : vector<8x128xf32>
    %cst_70 = arith.constant 1.000000e+00 : f32
    %246 = vector.broadcast %cst_70 : f32 to vector<8x128xf32>
    %247 = arith.addf %246, %245 : vector<8x128xf32>
    %248 = arith.divf %246, %247 : vector<8x128xf32>
    %249 = math.tanh %235 : vector<8x128xf32>
    %250 = arith.mulf %248, %249 : vector<8x128xf32>
    %251 = arith.addf %243, %250 : vector<8x128xf32>
    %252 = math.tanh %251 : vector<8x128xf32>
    %253 = arith.negf %237 : vector<8x128xf32>
    %254 = math.exp %253 : vector<8x128xf32>
    %cst_71 = arith.constant 1.000000e+00 : f32
    %255 = vector.broadcast %cst_71 : f32 to vector<8x128xf32>
    %256 = arith.addf %255, %254 : vector<8x128xf32>
    %257 = arith.divf %255, %256 : vector<8x128xf32>
    %258 = arith.mulf %252, %257 : vector<8x128xf32>
    %259 = arith.truncf %258 : vector<8x128xf32> to vector<8x128xbf16>
    %260 = arith.index_cast %c6_i32 : i32 to index
    %c0_72 = arith.constant 0 : index
    %c0_73 = arith.constant 0 : index
    %261 = vector.load %arg5[%260, %c0_72, %c0_73] : memref<8x8x128xbf16, #tpu.memory_space<vmem>>, vector<1x8x128xbf16>
    %262 = vector.shape_cast %261 : vector<1x8x128xbf16> to vector<8x128xbf16>
    %263 = vector.shape_cast %259 : vector<8x128xbf16> to vector<1x8x128xbf16>
    tpu.vector_store %arg5[%260, %c0_72, %c0_73], %263 {strides = array<i32>} : memref<8x8x128xbf16, #tpu.memory_space<vmem>>, vector<1x8x128xbf16>,
    %c7_i32 = arith.constant 7 : i32
    %264 = arith.truncf %258 : vector<8x128xf32> to vector<8x128xbf16>
    %c0_74 = arith.constant 0 : index
    %c0_75 = arith.constant 0 : index
    %265 = vector.load %arg4[%c0_74, %c0_75] : memref<128x512xbf16, #tpu.memory_space<vmem>>, vector<128x512xbf16>
    %cst_76 = arith.constant dense<0.000000e+00> : vector<8x512xf32>
    %266 = tpu.matmul %264, %265, %cst_76 {dimension_numbers = #tpu.dot_dimension_numbers<[1], [0], [0], [1], [0, 0, 1, 1], [], []>} : vector<8x128xbf16>, vector<128x512xbf16>, vector<8x512xf32> -> vector<8x512xf32>
    %267 = arith.index_cast %c7_i32 : i32 to index
    %c0_77 = arith.constant 0 : index
    %c0_78 = arith.constant 0 : index
    %268 = vector.load %arg1[%267, %c0_77, %c0_78] : memref<8x8x512xf32, #tpu.memory_space<vmem>>, vector<1x8x512xf32>
    %269 = vector.shape_cast %268 : vector<1x8x512xf32> to vector<8x512xf32>
    %270 = arith.addf %266, %269 : vector<8x512xf32>
    %271 = vector.extract_strided_slice %270 {offsets = [0, 0], sizes = [8, 128], strides = [1, 1]} : vector<8x512xf32> to vector<8x128xf32>
    %272 = vector.extract_strided_slice %270 {offsets = [0, 128], sizes = [8, 128], strides = [1, 1]} : vector<8x512xf32> to vector<8x128xf32>
    %273 = vector.extract_strided_slice %270 {offsets = [0, 256], sizes = [8, 128], strides = [1, 1]} : vector<8x512xf32> to vector<8x128xf32>
    %274 = vector.extract_strided_slice %270 {offsets = [0, 384], sizes = [8, 128], strides = [1, 1]} : vector<8x512xf32> to vector<8x128xf32>
    %275 = arith.negf %273 : vector<8x128xf32>
    %276 = math.exp %275 : vector<8x128xf32>
    %cst_79 = arith.constant 1.000000e+00 : f32
    %277 = vector.broadcast %cst_79 : f32 to vector<8x128xf32>
    %278 = arith.addf %277, %276 : vector<8x128xf32>
    %279 = arith.divf %277, %278 : vector<8x128xf32>
    %280 = arith.mulf %251, %279 : vector<8x128xf32>
    %281 = arith.negf %271 : vector<8x128xf32>
    %282 = math.exp %281 : vector<8x128xf32>
    %cst_80 = arith.constant 1.000000e+00 : f32
    %283 = vector.broadcast %cst_80 : f32 to vector<8x128xf32>
    %284 = arith.addf %283, %282 : vector<8x128xf32>
    %285 = arith.divf %283, %284 : vector<8x128xf32>
    %286 = math.tanh %272 : vector<8x128xf32>
    %287 = arith.mulf %285, %286 : vector<8x128xf32>
    %288 = arith.addf %280, %287 : vector<8x128xf32>
    %289 = math.tanh %288 : vector<8x128xf32>
    %290 = arith.negf %274 : vector<8x128xf32>
    %291 = math.exp %290 : vector<8x128xf32>
    %cst_81 = arith.constant 1.000000e+00 : f32
    %292 = vector.broadcast %cst_81 : f32 to vector<8x128xf32>
    %293 = arith.addf %292, %291 : vector<8x128xf32>
    %294 = arith.divf %292, %293 : vector<8x128xf32>
    %295 = arith.mulf %289, %294 : vector<8x128xf32>
    %296 = arith.truncf %295 : vector<8x128xf32> to vector<8x128xbf16>
    %297 = arith.index_cast %c7_i32 : i32 to index
    %c0_82 = arith.constant 0 : index
    %c0_83 = arith.constant 0 : index
    %298 = vector.load %arg5[%297, %c0_82, %c0_83] : memref<8x8x128xbf16, #tpu.memory_space<vmem>>, vector<1x8x128xbf16>
    %299 = vector.shape_cast %298 : vector<1x8x128xbf16> to vector<8x128xbf16>
    %300 = vector.shape_cast %296 : vector<8x128xbf16> to vector<1x8x128xbf16>
    tpu.vector_store %arg5[%297, %c0_82, %c0_83], %300 {strides = array<i32>} : memref<8x8x128xbf16, #tpu.memory_space<vmem>>, vector<1x8x128xbf16>,
    %c8_i32 = arith.constant 8 : i32
    %c0_84 = arith.constant 0 : index
    %c0_85 = arith.constant 0 : index
    %301 = vector.load %arg8[%c0_84, %c0_85] : memref<8x128xf32, #tpu.memory_space<vmem>>, vector<8x128xf32>
    tpu.vector_store %arg8[%c0_84, %c0_85], %295 {strides = array<i32>} : memref<8x128xf32, #tpu.memory_space<vmem>>, vector<8x128xf32>,
    %c0_86 = arith.constant 0 : index
    %c0_87 = arith.constant 0 : index
    %302 = vector.load %arg9[%c0_86, %c0_87] : memref<8x128xf32, #tpu.memory_space<vmem>>, vector<8x128xf32>
    tpu.vector_store %arg9[%c0_86, %c0_87], %288 {strides = array<i32>} : memref<8x128xf32, #tpu.memory_space<vmem>>, vector<8x128xf32>,
    %c0_i32_88 = arith.constant 0 : i32
    %303 = arith.cmpi eq, %arg0, %c0_i32_88 : i32
    %304 = arith.extui %303 : i1 to i32
    %c0_i32_89 = arith.constant 0 : i32
    %305 = arith.cmpi ne, %304, %c0_i32_89 : i32
    scf.if %305 {
      %c0_90 = arith.constant 0 : index
      %c0_91 = arith.constant 0 : index
      %306 = vector.load %arg6[%c0_90, %c0_91] : memref<8x128xf32, #tpu.memory_space<vmem>>, vector<8x128xf32>
      tpu.vector_store %arg6[%c0_90, %c0_91], %295 {strides = array<i32>} : memref<8x128xf32, #tpu.memory_space<vmem>>, vector<8x128xf32>,
      %c0_92 = arith.constant 0 : index
      %c0_93 = arith.constant 0 : index
      %307 = vector.load %arg7[%c0_92, %c0_93] : memref<8x128xf32, #tpu.memory_space<vmem>>, vector<8x128xf32>
      tpu.vector_store %arg7[%c0_92, %c0_93], %288 {strides = array<i32>} : memref<8x128xf32, #tpu.memory_space<vmem>>, vector<8x128xf32>,
    } else {
    }
    return
  }
  func.func @transform_0(%arg0: i32) -> (i32, i32, i32) {
    %c0_i32 = arith.constant 0 : i32
    %c0_i32_0 = arith.constant 0 : i32
    %c0_i32_1 = arith.constant 0 : i32
    return %arg0, %c0_i32, %c0_i32_0 : i32, i32, i32
  }
  func.func @transform_1(%arg0: i32) -> (i32, i32) {
    %c0_i32 = arith.constant 0 : i32
    %c0_i32_0 = arith.constant 0 : i32
    %c0_i32_1 = arith.constant 0 : i32
    return %c0_i32, %c0_i32_0 : i32, i32
  }
  func.func @transform_2(%arg0: i32) -> (i32, i32) {
    %c0_i32 = arith.constant 0 : i32
    %c0_i32_0 = arith.constant 0 : i32
    %c0_i32_1 = arith.constant 0 : i32
    return %c0_i32, %c0_i32_0 : i32, i32
  }
  func.func @transform_3(%arg0: i32) -> (i32, i32) {
    %c0_i32 = arith.constant 0 : i32
    %c0_i32_0 = arith.constant 0 : i32
    %c0_i32_1 = arith.constant 0 : i32
    return %c0_i32, %c0_i32_0 : i32, i32
  }
  func.func @transform_4(%arg0: i32) -> (i32, i32, i32) {
    %c0_i32 = arith.constant 0 : i32
    %c0_i32_0 = arith.constant 0 : i32
    %c0_i32_1 = arith.constant 0 : i32
    return %arg0, %c0_i32, %c0_i32_0 : i32, i32, i32
  }
  func.func @transform_5(%arg0: i32) -> (i32, i32) {
    %c0_i32 = arith.constant 0 : i32
    %c0_i32_0 = arith.constant 0 : i32
    %c0_i32_1 = arith.constant 0 : i32
    return %c0_i32, %c0_i32_0 : i32, i32
  }
  func.func @transform_6(%arg0: i32) -> (i32, i32) {
    %c0_i32 = arith.constant 0 : i32
    %c0_i32_0 = arith.constant 0 : i32
    %c0_i32_1 = arith.constant 0 : i32
    return %c0_i32, %c0_i32_0 : i32, i32
  }
}

</mosaic_0001>

<llo_original>
// kernel: lstm_forward_sequence.1
$region0: #{lstm_forward_sequence.1}
  #allocation0 [shape = 'u32[]', space=smem, size = 0x4, offset = 0x4, fixed_abs, tag = 'smem constant byte address 0x4 - core index']
  #allocation1 [shape = 'u32[144,128]{1,0:T(1,128)}', space=vmem, size = 0x12000, scoped, tag = 'internal scratch']
  #allocation2 [shape = 'f32[8,128]{1,0:T(8,128)}', space=vmem, size = 0x1000, scoped, tag = 'scratch operand']
  #allocation3 [shape = 'f32[8,128]{1,0:T(8,128)}', space=vmem, size = 0x1000, scoped, tag = 'scratch operand']
  %s0 = inlined_call_operand.vmem [shape: f32[8,8,512], index: 0, kind: input, shape index: {}]
  %s1 = inlined_call_operand.vmem [shape: f32[8,128], index: 1, kind: input, shape index: {}]
  %s2 = inlined_call_operand.vmem [shape: f32[8,128], index: 2, kind: input, shape index: {}]
  %s3 = inlined_call_operand.vmem [shape: bf16[128,512], index: 3, kind: input, shape index: {}]
  %s4 = inlined_call_operand.hbm [shape: bf16[8,8,128], index: 4, kind: output, shape index: {0}]
  %s5 = inlined_call_operand.hbm [shape: f32[8,128], index: 5, kind: output, shape index: {1}]
  %s6 = inlined_call_operand.hbm [shape: f32[8,128], index: 6, kind: output, shape index: {2}]
  %7 = xla_tuple %s4, %s5, %s6
  %s8 = sld [smem:[#allocation0]]
  $region50: #{lstm_forward_sequence.1} parent=0
    _
  %s10 = ssub.s32 1, %s8
  %s11 = scalar_select 0, %s10, %s8
  $region1: #{lstm_forward_sequence.1} parent=0
    #allocation4 [shape = 'u8[16384]{0}', space=vmem, size = 0x4000, scoped, tag = 'output window, operand 0, single buffered']
    #allocation5 [shape = 's32[1]{0}', space=sflag, size = 0x4, scoped, tag = 'scoped memory for lstm_forward_sequence.1']
    #allocation6 [shape = 'u8[4096]{0}', space=vmem, size = 0x1000, scoped, tag = 'output window, operand 1, single buffered']
    #allocation7 [shape = 's32[1]{0}', space=sflag, size = 0x4, scoped, tag = 'scoped memory for lstm_forward_sequence.1']
    #allocation8 [shape = 'u8[4096]{0}', space=vmem, size = 0x1000, scoped, tag = 'output window, operand 2, single buffered']
    %12 = vsyncpa [#allocation5], 0
    %13 = vsyncpa [#allocation7], 0
    // Predicated region
    $region2: #{lstm_forward_sequence.1} parent=1 // pred_check
      _
    $region3: #{lstm_forward_sequence.1} parent=1 // pred_check_branch
      %15 = sbr.rel (0) target = $region5
    $region4: #{lstm_forward_sequence.1} parent=1 // pred_region
      _
    $region5: #{lstm_forward_sequence.1} parent=1 // pred_fallthru
      _
    // Predicated region
    $region6: #{lstm_forward_sequence.1} parent=1 // pred_check
      _
    $region7: #{lstm_forward_sequence.1} parent=1 // pred_check_branch
      %17 = sbr.rel (0) target = $region9
    $region8: #{lstm_forward_sequence.1} parent=1 // pred_region
      _
    $region9: #{lstm_forward_sequence.1} parent=1 // pred_fallthru
      _
    // Predicated region
    $region10: #{lstm_forward_sequence.1} parent=1 // pred_check
      _
    $region11: #{lstm_forward_sequence.1} parent=1 // pred_check_branch
      %19 = sbr.rel (0) target = $region13
    $region12: #{lstm_forward_sequence.1} parent=1 // pred_region
      _
    $region13: #{lstm_forward_sequence.1} parent=1 // pred_fallthru
      _
    // Predicated region
    $region14: #{lstm_forward_sequence.1} parent=1 // pred_check
      _
    $region15: #{lstm_forward_sequence.1} parent=1 // pred_check_branch
      %21 = sbr.rel (0) target = $region17
    $region16: #{lstm_forward_sequence.1} parent=1 // pred_region
      _
    $region17: #{lstm_forward_sequence.1} parent=1 // pred_fallthru
      _
    %p23 = scmp.eq.s32.totalorder 0, 0
    // Predicated region
    $region18: #{lstm_forward_sequence.1} parent=1 // pred_check
      %p24 = pneg %p23
    $region19: #{lstm_forward_sequence.1} parent=1 // pred_check_branch
      %26 = sbr.rel (%p24) target = $region21
    $region20: #{lstm_forward_sequence.1} parent=1 // pred_region
      %v27 = vld [vmem:[%s1] sm:$0xff]
      %28 = vst [vmem:[#allocation2] sm:$0xff] %v27
      %v29 = vld [vmem:[%s2] sm:$0xff]
      %30 = vst [vmem:[#allocation3] sm:$0xff] %v29
    $region21: #{lstm_forward_sequence.1} parent=1 // pred_fallthru
      _
    %v31 = vld [vmem:[#allocation2] sm:$0xff]
    %v32 = vld [vmem:[#allocation3] sm:$0xff]
    %v33 = vpack.c.bf16 %v31, %v31
    %v34 = vld [vmem:[%s3] sm:$0xff]
    %v35 = vld [vmem:[%s3 + $0x8] sm:$0xff]
    %v36 = vld [vmem:[%s3 + $0x10] sm:$0xff]
    %v37 = vld [vmem:[%s3 + $0x18] sm:$0xff]
    %v38 = vld [vmem:[%s3 + $0x20] sm:$0xff]
    %v39 = vld [vmem:[%s3 + $0x28] sm:$0xff]
    %v40 = vld [vmem:[%s3 + $0x30] sm:$0xff]
    %v41 = vld [vmem:[%s3 + $0x38] sm:$0xff]
    %v42 = vld [vmem:[%s3 + $0x40] sm:$0xff]
    %v43 = vld [vmem:[%s3 + $0x48] sm:$0xff]
    %v44 = vld [vmem:[%s3 + $0x50] sm:$0xff]
    %v45 = vld [vmem:[%s3 + $0x58] sm:$0xff]
    %v46 = vld [vmem:[%s3 + $0x60] sm:$0xff]
    %v47 = vld [vmem:[%s3 + $0x68] sm:$0xff]
    %v48 = vld [vmem:[%s3 + $0x70] sm:$0xff]
    %v49 = vld [vmem:[%s3 + $0x78] sm:$0xff]
    %v50 = vld [vmem:[%s3 + $0x80] sm:$0xff]
    %v51 = vld [vmem:[%s3 + $0x88] sm:$0xff]
    %v52 = vld [vmem:[%s3 + $0x90] sm:$0xff]
    %v53 = vld [vmem:[%s3 + $0x98] sm:$0xff]
    %v54 = vld [vmem:[%s3 + $0xa0] sm:$0xff]
    %v55 = vld [vmem:[%s3 + $0xa8] sm:$0xff]
    %v56 = vld [vmem:[%s3 + $0xb0] sm:$0xff]
    %v57 = vld [vmem:[%s3 + $0xb8] sm:$0xff]
    %v58 = vld [vmem:[%s3 + $0xc0] sm:$0xff]
    %v59 = vld [vmem:[%s3 + $0xc8] sm:$0xff]
    %v60 = vld [vmem:[%s3 + $0xd0] sm:$0xff]
    %v61 = vld [vmem:[%s3 + $0xd8] sm:$0xff]
    %v62 = vld [vmem:[%s3 + $0xe0] sm:$0xff]
    %v63 = vld [vmem:[%s3 + $0xe8] sm:$0xff]
    %v64 = vld [vmem:[%s3 + $0xf0] sm:$0xff]
    %v65 = vld [vmem:[%s3 + $0xf8] sm:$0xff]
    %v66 = vld [vmem:[%s0] sm:$0xff]
    %v67 = vld [vmem:[%s0 + $0x8] sm:$0xff]
    %v68 = vld [vmem:[%s0 + $0x10] sm:$0xff]
    %v69 = vld [vmem:[%s0 + $0x18] sm:$0xff]
    %v102 = vunpack.c.l.b16 %v34
    %v103 = vunpack.c.h.b16 %v34
    %v104 = vunpack.c.l.b16 %v35
    %v105 = vunpack.c.h.b16 %v35
    %v106 = vunpack.c.l.b16 %v36
    %v107 = vunpack.c.h.b16 %v36
    %v108 = vunpack.c.l.b16 %v37
    %v109 = vunpack.c.h.b16 %v37
    %v110 = vunpack.c.l.b16 %v38
    %v111 = vunpack.c.h.b16 %v38
    %v112 = vunpack.c.l.b16 %v39
    %v113 = vunpack.c.h.b16 %v39
    %v114 = vunpack.c.l.b16 %v40
    %v115 = vunpack.c.h.b16 %v40
    %v116 = vunpack.c.l.b16 %v41
    %v117 = vunpack.c.h.b16 %v41
    %v118 = vunpack.c.l.b16 %v42
    %v119 = vunpack.c.h.b16 %v42
    %v120 = vunpack.c.l.b16 %v43
    %v121 = vunpack.c.h.b16 %v43
    %v122 = vunpack.c.l.b16 %v44
    %v123 = vunpack.c.h.b16 %v44
    %v124 = vunpack.c.l.b16 %v45
    %v125 = vunpack.c.h.b16 %v45
    %v126 = vunpack.c.l.b16 %v46
    %v127 = vunpack.c.h.b16 %v46
    %v128 = vunpack.c.l.b16 %v47
    %v129 = vunpack.c.h.b16 %v47
    %v130 = vunpack.c.l.b16 %v48
    %v131 = vunpack.c.h.b16 %v48
    %v132 = vunpack.c.l.b16 %v49
    %v133 = vunpack.c.h.b16 %v49
    %v134 = vunpack.c.l.b16 %v50
    %v135 = vunpack.c.h.b16 %v50
    %v136 = vunpack.c.l.b16 %v51
    %v137 = vunpack.c.h.b16 %v51
    %v138 = vunpack.c.l.b16 %v52
    %v139 = vunpack.c.h.b16 %v52
    %v140 = vunpack.c.l.b16 %v53
    %v141 = vunpack.c.h.b16 %v53
    %v142 = vunpack.c.l.b16 %v54
    %v143 = vunpack.c.h.b16 %v54
    %v144 = vunpack.c.l.b16 %v55
    %v145 = vunpack.c.h.b16 %v55
    %v146 = vunpack.c.l.b16 %v56
    %v147 = vunpack.c.h.b16 %v56
    %v148 = vunpack.c.l.b16 %v57
    %v149 = vunpack.c.h.b16 %v57
    %v150 = vunpack.c.l.b16 %v58
    %v151 = vunpack.c.h.b16 %v58
    %v152 = vunpack.c.l.b16 %v59
    %v153 = vunpack.c.h.b16 %v59
    %v154 = vunpack.c.l.b16 %v60
    %v155 = vunpack.c.h.b16 %v60
    %v156 = vunpack.c.l.b16 %v61
    %v157 = vunpack.c.h.b16 %v61
    %v158 = vunpack.c.l.b16 %v62
    %v159 = vunpack.c.h.b16 %v62
    %v160 = vunpack.c.l.b16 %v63
    %v161 = vunpack.c.h.b16 %v63
    %v162 = vunpack.c.l.b16 %v64
    %v163 = vunpack.c.h.b16 %v64
    %v164 = vunpack.c.l.b16 %v65
    %v165 = vunpack.c.h.b16 %v65
    %v166 = vpack.c.b16 %v106, %v102
    %v167 = vpack.c.b16 %v107, %v103
    %v168 = vpack.c.b16 %v108, %v104
    %v169 = vpack.c.b16 %v109, %v105
    %v170 = vpack.c.b16 %v114, %v110
    %v171 = vpack.c.b16 %v115, %v111
    %v172 = vpack.c.b16 %v116, %v112
    %v173 = vpack.c.b16 %v117, %v113
    %v174 = vpack.c.b16 %v122, %v118
    %v175 = vpack.c.b16 %v123, %v119
    %v176 = vpack.c.b16 %v124, %v120
    %v177 = vpack.c.b16 %v125, %v121
    %v178 = vpack.c.b16 %v130, %v126
    %v179 = vpack.c.b16 %v131, %v127
    %v180 = vpack.c.b16 %v132, %v128
    %v181 = vpack.c.b16 %v133, %v129
    %v182 = vpack.c.b16 %v138, %v134
    %v183 = vpack.c.b16 %v139, %v135
    %v184 = vpack.c.b16 %v140, %v136
    %v185 = vpack.c.b16 %v141, %v137
    %v186 = vpack.c.b16 %v146, %v142
    %v187 = vpack.c.b16 %v147, %v143
    %v188 = vpack.c.b16 %v148, %v144
    %v189 = vpack.c.b16 %v149, %v145
    %v190 = vpack.c.b16 %v154, %v150
    %v191 = vpack.c.b16 %v155, %v151
    %v192 = vpack.c.b16 %v156, %v152
    %v193 = vpack.c.b16 %v157, %v153
    %v194 = vpack.c.b16 %v162, %v158
    %v195 = vpack.c.b16 %v163, %v159
    %v196 = vpack.c.b16 %v164, %v160
    %v197 = vpack.c.b16 %v165, %v161
    %230 = vmatprep.subr.bf16.mxu0 %v195
    %231 = vmatpush1.bf16.msra.mxu0 %v194
    %232 = vmatprep.subr.bf16.mxu0 %v191
    %233 = vmatpush1.bf16.msra.mxu0 %v190
    %234 = vmatprep.subr.bf16.mxu0 %v187
    %235 = vmatpush1.bf16.msra.mxu0 %v186
    %236 = vmatprep.subr.bf16.mxu0 %v183
    %237 = vmatpush1.bf16.msra.mxu0 %v182
    %238 = vmatprep.subr.bf16.mxu0 %v179
    %239 = vmatpush1.bf16.msra.mxu0 %v178
    %240 = vmatprep.subr.bf16.mxu0 %v175
    %241 = vmatpush1.bf16.msra.mxu0 %v174
    %242 = vmatprep.subr.bf16.mxu0 %v171
    %243 = vmatpush1.bf16.msra.mxu0 %v170
    %244 = vmatprep.subr.bf16.mxu0 %v167
    %245 = vmatpush1.bf16.msra.mxu0 %v166
    %246 = vmatprep.subr.bf16.mxu0 0
    %247 = vmatpush2.bf16.msra.mxu0 0
    %248 = vmatprep.subr.bf16.mxu0 0
    %249 = vmatpush2.bf16.msra.mxu0 0
    %250 = vmatprep.subr.bf16.mxu0 0
    %251 = vmatpush2.bf16.msra.mxu0 0
    %252 = vmatprep.subr.bf16.mxu0 0
    %253 = vmatpush2.bf16.msra.mxu0 0
    %254 = vmatprep.subr.bf16.mxu0 0
    %255 = vmatpush2.bf16.msra.mxu0 0
    %256 = vmatprep.subr.bf16.mxu0 0
    %257 = vmatpush2.bf16.msra.mxu0 0
    %258 = vmatprep.subr.bf16.mxu0 0
    %259 = vmatpush2.bf16.msra.mxu0 0
    %260 = vmatprep.subr.bf16.mxu0 0
    %261 = vmatpush2.bf16.msra.mxu0 0
    %262 = vmatprep.mubr.bf16.mxu0 0
    %263 = vmatmul.mubr.bf16.gmra.mxu0 %v33
    %v264 = vpop.f32.mrf.mxu0
    %v265 = vadd.f32 %v66, %v264
    %v266 = vpop.f32.mrf.mxu0
    %v267 = vadd.f32 %v67, %v266
    %v268 = vpop.f32.mrf.mxu0
    %v269 = vpop.f32.mrf.mxu0
    %270 = vdwg.mxu0
    %271 = vmatprep.subr.bf16.mxu0 %v197
    %272 = vmatpush1.bf16.msra.mxu0 %v196
    %273 = vmatprep.subr.bf16.mxu0 %v193
    %274 = vmatpush1.bf16.msra.mxu0 %v192
    %275 = vmatprep.subr.bf16.mxu0 %v189
    %276 = vmatpush1.bf16.msra.mxu0 %v188
    %277 = vmatprep.subr.bf16.mxu0 %v185
    %278 = vmatpush1.bf16.msra.mxu0 %v184
    %279 = vmatprep.subr.bf16.mxu0 %v181
    %280 = vmatpush1.bf16.msra.mxu0 %v180
    %281 = vmatprep.subr.bf16.mxu0 %v177
    %282 = vmatpush1.bf16.msra.mxu0 %v176
    %283 = vmatprep.subr.bf16.mxu0 %v173
    %284 = vmatpush1.bf16.msra.mxu0 %v172
    %285 = vmatprep.subr.bf16.mxu0 %v169
    %286 = vmatpush1.bf16.msra.mxu0 %v168
    %287 = vmatprep.subr.bf16.mxu0 0
    %288 = vmatpush2.bf16.msra.mxu0 0
    %289 = vmatprep.subr.bf16.mxu0 0
    %290 = vmatpush2.bf16.msra.mxu0 0
    %291 = vmatprep.subr.bf16.mxu0 0
    %292 = vmatpush2.bf16.msra.mxu0 0
    %293 = vmatprep.subr.bf16.mxu0 0
    %294 = vmatpush2.bf16.msra.mxu0 0
    %295 = vmatprep.subr.bf16.mxu0 0
    %296 = vmatpush2.bf16.msra.mxu0 0
    %297 = vmatprep.subr.bf16.mxu0 0
    %298 = vmatpush2.bf16.msra.mxu0 0
    %299 = vmatprep.subr.bf16.mxu0 0
    %300 = vmatpush2.bf16.msra.mxu0 0
    %301 = vmatprep.subr.bf16.mxu0 0
    %302 = vmatpush2.bf16.msra.mxu0 0
    %303 = vmatprep.mubr.bf16.mxu0 0
    %304 = vmatmul.mubr.bf16.gmra.mxu0 %v33
    %v305 = vpop.f32.mrf.mxu0
    %v306 = vadd.f32 %v68, %v305
    %v307 = vpop.f32.mrf.mxu0
    %v308 = vadd.f32 %v69, %v307
    %v309 = vpop.f32.mrf.mxu0
    %v310 = vpop.f32.mrf.mxu0
    %311 = vdwg.mxu0
    %v312 = vxor.u32 %v306, 2147483648
    %v313 = vmul.f32 %v312, 1.442695
    %v314 = vpow.pop %v313
    %v315 = vadd.f32 %v314, 1.0
    %v316 = vrcp.pop %v315
    %v317 = vmul.f32 1.0, %v316
    %v318 = vmul.f32 %v32, %v317
    %v319 = vxor.u32 %v265, 2147483648
    %v320 = vmul.f32 %v319, 1.442695
    %v321 = vpow.pop %v320
    %v322 = vadd.f32 %v321, 1.0
    %v323 = vrcp.pop %v322
    %v324 = vmul.f32 1.0, %v323
    %v325 = vtanh.pop %v267
    %v326 = vmul.f32 %v324, %v325
    %v327 = vadd.f32 %v318, %v326
    %v328 = vtanh.pop %v327
    %v329 = vxor.u32 %v308, 2147483648
    %v330 = vmul.f32 %v329, 1.442695
    %v331 = vpow.pop %v330
    %v332 = vadd.f32 %v331, 1.0
    %v333 = vrcp.pop %v332
    %v334 = vmul.f32 1.0, %v333
    %v335 = vmul.f32 %v328, %v334
    %v336 = vpack.c.bf16 %v335, %v335
    %337 = vst [vmem:[#allocation4] sm:$0xf] %v336
    %v338 = vld [vmem:[%s3] sm:$0xff]
    %v339 = vld [vmem:[%s3 + $0x8] sm:$0xff]
    %v340 = vld [vmem:[%s3 + $0x10] sm:$0xff]
    %v341 = vld [vmem:[%s3 + $0x18] sm:$0xff]
    %v342 = vld [vmem:[%s3 + $0x20] sm:$0xff]
    %v343 = vld [vmem:[%s3 + $0x28] sm:$0xff]
    %v344 = vld [vmem:[%s3 + $0x30] sm:$0xff]
    %v345 = vld [vmem:[%s3 + $0x38] sm:$0xff]
    %v346 = vld [vmem:[%s3 + $0x40] sm:$0xff]
    %v347 = vld [vmem:[%s3 + $0x48] sm:$0xff]
    %v348 = vld [vmem:[%s3 + $0x50] sm:$0xff]
    %v349 = vld [vmem:[%s3 + $0x58] sm:$0xff]
    %v350 = vld [vmem:[%s3 + $0x60] sm:$0xff]
    %v351 = vld [vmem:[%s3 + $0x68] sm:$0xff]
    %v352 = vld [vmem:[%s3 + $0x70] sm:$0xff]
    %v353 = vld [vmem:[%s3 + $0x78] sm:$0xff]
    %v354 = vld [vmem:[%s3 + $0x80] sm:$0xff]
    %v355 = vld [vmem:[%s3 + $0x88] sm:$0xff]
    %v356 = vld [vmem:[%s3 + $0x90] sm:$0xff]
    %v357 = vld [vmem:[%s3 + $0x98] sm:$0xff]
    %v358 = vld [vmem:[%s3 + $0xa0] sm:$0xff]
    %v359 = vld [vmem:[%s3 + $0xa8] sm:$0xff]
    %v360 = vld [vmem:[%s3 + $0xb0] sm:$0xff]
    %v361 = vld [vmem:[%s3 + $0xb8] sm:$0xff]
    %v362 = vld [vmem:[%s3 + $0xc0] sm:$0xff]
    %v363 = vld [vmem:[%s3 + $0xc8] sm:$0xff]
    %v364 = vld [vmem:[%s3 + $0xd0] sm:$0xff]
    %v365 = vld [vmem:[%s3 + $0xd8] sm:$0xff]
    %v366 = vld [vmem:[%s3 + $0xe0] sm:$0xff]
    %v367 = vld [vmem:[%s3 + $0xe8] sm:$0xff]
    %v368 = vld [vmem:[%s3 + $0xf0] sm:$0xff]
    %v369 = vld [vmem:[%s3 + $0xf8] sm:$0xff]
    %s370 = scalar_lea.vmem %s0, 32
    %v371 = vld [vmem:[%s370] sm:$0xff]
    %v372 = vld [vmem:[%s370 + $0x8] sm:$0xff]
    %v373 = vld [vmem:[%s370 + $0x10] sm:$0xff]
    %v374 = vld [vmem:[%s370 + $0x18] sm:$0xff]
    %v407 = vunpack.c.l.b16 %v338
    %v408 = vunpack.c.h.b16 %v338
    %v409 = vunpack.c.l.b16 %v339
    %v410 = vunpack.c.h.b16 %v339
    %v411 = vunpack.c.l.b16 %v340
    %v412 = vunpack.c.h.b16 %v340
    %v413 = vunpack.c.l.b16 %v341
    %v414 = vunpack.c.h.b16 %v341
    %v415 = vunpack.c.l.b16 %v342
    %v416 = vunpack.c.h.b16 %v342
    %v417 = vunpack.c.l.b16 %v343
    %v418 = vunpack.c.h.b16 %v343
    %v419 = vunpack.c.l.b16 %v344
    %v420 = vunpack.c.h.b16 %v344
    %v421 = vunpack.c.l.b16 %v345
    %v422 = vunpack.c.h.b16 %v345
    %v423 = vunpack.c.l.b16 %v346
    %v424 = vunpack.c.h.b16 %v346
    %v425 = vunpack.c.l.b16 %v347
    %v426 = vunpack.c.h.b16 %v347
    %v427 = vunpack.c.l.b16 %v348
    %v428 = vunpack.c.h.b16 %v348
    %v429 = vunpack.c.l.b16 %v349
    %v430 = vunpack.c.h.b16 %v349
    %v431 = vunpack.c.l.b16 %v350
    %v432 = vunpack.c.h.b16 %v350
    %v433 = vunpack.c.l.b16 %v351
    %v434 = vunpack.c.h.b16 %v351
    %v435 = vunpack.c.l.b16 %v352
    %v436 = vunpack.c.h.b16 %v352
    %v437 = vunpack.c.l.b16 %v353
    %v438 = vunpack.c.h.b16 %v353
    %v439 = vunpack.c.l.b16 %v354
    %v440 = vunpack.c.h.b16 %v354
    %v441 = vunpack.c.l.b16 %v355
    %v442 = vunpack.c.h.b16 %v355
    %v443 = vunpack.c.l.b16 %v356
    %v444 = vunpack.c.h.b16 %v356
    %v445 = vunpack.c.l.b16 %v357
    %v446 = vunpack.c.h.b16 %v357
    %v447 = vunpack.c.l.b16 %v358
    %v448 = vunpack.c.h.b16 %v358
    %v449 = vunpack.c.l.b16 %v359
    %v450 = vunpack.c.h.b16 %v359
    %v451 = vunpack.c.l.b16 %v360
    %v452 = vunpack.c.h.b16 %v360
    %v453 = vunpack.c.l.b16 %v361
    %v454 = vunpack.c.h.b16 %v361
    %v455 = vunpack.c.l.b16 %v362
    %v456 = vunpack.c.h.b16 %v362
    %v457 = vunpack.c.l.b16 %v363
    %v458 = vunpack.c.h.b16 %v363
    %v459 = vunpack.c.l.b16 %v364
    %v460 = vunpack.c.h.b16 %v364
    %v461 = vunpack.c.l.b16 %v365
    %v462 = vunpack.c.h.b16 %v365
    %v463 = vunpack.c.l.b16 %v366
    %v464 = vunpack.c.h.b16 %v366
    %v465 = vunpack.c.l.b16 %v367
    %v466 = vunpack.c.h.b16 %v367
    %v467 = vunpack.c.l.b16 %v368
    %v468 = vunpack.c.h.b16 %v368
    %v469 = vunpack.c.l.b16 %v369
    %v470 = vunpack.c.h.b16 %v369
    %v471 = vpack.c.b16 %v411, %v407
    %v472 = vpack.c.b16 %v412, %v408
    %v473 = vpack.c.b16 %v413, %v409
    %v474 = vpack.c.b16 %v414, %v410
    %v475 = vpack.c.b16 %v419, %v415
    %v476 = vpack.c.b16 %v420, %v416
    %v477 = vpack.c.b16 %v421, %v417
    %v478 = vpack.c.b16 %v422, %v418
    %v479 = vpack.c.b16 %v427, %v423
    %v480 = vpack.c.b16 %v428, %v424
    %v481 = vpack.c.b16 %v429, %v425
    %v482 = vpack.c.b16 %v430, %v426
    %v483 = vpack.c.b16 %v435, %v431
    %v484 = vpack.c.b16 %v436, %v432
    %v485 = vpack.c.b16 %v437, %v433
    %v486 = vpack.c.b16 %v438, %v434
    %v487 = vpack.c.b16 %v443, %v439
    %v488 = vpack.c.b16 %v444, %v440
    %v489 = vpack.c.b16 %v445, %v441
    %v490 = vpack.c.b16 %v446, %v442
    %v491 = vpack.c.b16 %v451, %v447
    %v492 = vpack.c.b16 %v452, %v448
    %v493 = vpack.c.b16 %v453, %v449
    %v494 = vpack.c.b16 %v454, %v450
    %v495 = vpack.c.b16 %v459, %v455
    %v496 = vpack.c.b16 %v460, %v456
    %v497 = vpack.c.b16 %v461, %v457
    %v498 = vpack.c.b16 %v462, %v458
    %v499 = vpack.c.b16 %v467, %v463
    %v500 = vpack.c.b16 %v468, %v464
    %v501 = vpack.c.b16 %v469, %v465
    %v502 = vpack.c.b16 %v470, %v466
    %535 = vmatprep.subr.bf16.mxu0 %v500
    %536 = vmatpush1.bf16.msra.mxu0 %v499
    %537 = vmatprep.subr.bf16.mxu0 %v496
    %538 = vmatpush1.bf16.msra.mxu0 %v495
    %539 = vmatprep.subr.bf16.mxu0 %v492
    %540 = vmatpush1.bf16.msra.mxu0 %v491
    %541 = vmatprep.subr.bf16.mxu0 %v488
    %542 = vmatpush1.bf16.msra.mxu0 %v487
    %543 = vmatprep.subr.bf16.mxu0 %v484
    %544 = vmatpush1.bf16.msra.mxu0 %v483
    %545 = vmatprep.subr.bf16.mxu0 %v480
    %546 = vmatpush1.bf16.msra.mxu0 %v479
    %547 = vmatprep.subr.bf16.mxu0 %v476
    %548 = vmatpush1.bf16.msra.mxu0 %v475
    %549 = vmatprep.subr.bf16.mxu0 %v472
    %550 = vmatpush1.bf16.msra.mxu0 %v471
    %551 = vmatprep.subr.bf16.mxu0 0
    %552 = vmatpush2.bf16.msra.mxu0 0
    %553 = vmatprep.subr.bf16.mxu0 0
    %554 = vmatpush2.bf16.msra.mxu0 0
    %555 = vmatprep.subr.bf16.mxu0 0
    %556 = vmatpush2.bf16.msra.mxu0 0
    %557 = vmatprep.subr.bf16.mxu0 0
    %558 = vmatpush2.bf16.msra.mxu0 0
    %559 = vmatprep.subr.bf16.mxu0 0
    %560 = vmatpush2.bf16.msra.mxu0 0
    %561 = vmatprep.subr.bf16.mxu0 0
    %562 = vmatpush2.bf16.msra.mxu0 0
    %563 = vmatprep.subr.bf16.mxu0 0
    %564 = vmatpush2.bf16.msra.mxu0 0
    %565 = vmatprep.subr.bf16.mxu0 0
    %566 = vmatpush2.bf16.msra.mxu0 0
    %567 = vmatprep.mubr.bf16.mxu0 0
    %568 = vmatmul.mubr.bf16.gmra.mxu0 %v336
    %v569 = vpop.f32.mrf.mxu0
    %v570 = vadd.f32 %v371, %v569
    %v571 = vpop.f32.mrf.mxu0
    %v572 = vadd.f32 %v372, %v571
    %v573 = vpop.f32.mrf.mxu0
    %v574 = vpop.f32.mrf.mxu0
    %575 = vdwg.mxu0
    %576 = vmatprep.subr.bf16.mxu0 %v502
    %577 = vmatpush1.bf16.msra.mxu0 %v501
    %578 = vmatprep.subr.bf16.mxu0 %v498
    %579 = vmatpush1.bf16.msra.mxu0 %v497
    %580 = vmatprep.subr.bf16.mxu0 %v494
    %581 = vmatpush1.bf16.msra.mxu0 %v493
    %582 = vmatprep.subr.bf16.mxu0 %v490
    %583 = vmatpush1.bf16.msra.mxu0 %v489
    %584 = vmatprep.subr.bf16.mxu0 %v486
    %585 = vmatpush1.bf16.msra.mxu0 %v485
    %586 = vmatprep.subr.bf16.mxu0 %v482
    %587 = vmatpush1.bf16.msra.mxu0 %v481
    %588 = vmatprep.subr.bf16.mxu0 %v478
    %589 = vmatpush1.bf16.msra.mxu0 %v477
    %590 = vmatprep.subr.bf16.mxu0 %v474
    %591 = vmatpush1.bf16.msra.mxu0 %v473
    %592 = vmatprep.subr.bf16.mxu0 0
    %593 = vmatpush2.bf16.msra.mxu0 0
    %594 = vmatprep.subr.bf16.mxu0 0
    %595 = vmatpush2.bf16.msra.mxu0 0
    %596 = vmatprep.subr.bf16.mxu0 0
    %597 = vmatpush2.bf16.msra.mxu0 0
    %598 = vmatprep.subr.bf16.mxu0 0
    %599 = vmatpush2.bf16.msra.mxu0 0
    %600 = vmatprep.subr.bf16.mxu0 0
    %601 = vmatpush2.bf16.msra.mxu0 0
    %602 = vmatprep.subr.bf16.mxu0 0
    %603 = vmatpush2.bf16.msra.mxu0 0
    %604 = vmatprep.subr.bf16.mxu0 0
    %605 = vmatpush2.bf16.msra.mxu0 0
    %606 = vmatprep.subr.bf16.mxu0 0
    %607 = vmatpush2.bf16.msra.mxu0 0
    %608 = vmatprep.mubr.bf16.mxu0 0
    %609 = vmatmul.mubr.bf16.gmra.mxu0 %v336
    %v610 = vpop.f32.mrf.mxu0
    %v611 = vadd.f32 %v373, %v610
    %v612 = vpop.f32.mrf.mxu0
    %v613 = vadd.f32 %v374, %v612
    %v614 = vpop.f32.mrf.mxu0
    %v615 = vpop.f32.mrf.mxu0
    %616 = vdwg.mxu0
    %v617 = vxor.u32 %v611, 2147483648
    %v618 = vmul.f32 %v617, 1.442695
    %v619 = vpow.pop %v618
    %v620 = vadd.f32 %v619, 1.0
    %v621 = vrcp.pop %v620
    %v622 = vmul.f32 1.0, %v621
    %v623 = vmul.f32 %v327, %v622
    %v624 = vxor.u32 %v570, 2147483648
    %v625 = vmul.f32 %v624, 1.442695
    %v626 = vpow.pop %v625
    %v627 = vadd.f32 %v626, 1.0
    %v628 = vrcp.pop %v627
    %v629 = vmul.f32 1.0, %v628
    %v630 = vtanh.pop %v572
    %v631 = vmul.f32 %v629, %v630
    %v632 = vadd.f32 %v623, %v631
    %v633 = vtanh.pop %v632
    %v634 = vxor.u32 %v613, 2147483648
    %v635 = vmul.f32 %v634, 1.442695
    %v636 = vpow.pop %v635
    %v637 = vadd.f32 %v636, 1.0
    %v638 = vrcp.pop %v637
    %v639 = vmul.f32 1.0, %v638
    %v640 = vmul.f32 %v633, %v639
    %v641 = vpack.c.bf16 %v640, %v640
    %s642 = scalar_lea.vmem [#allocation4], 4
    %643 = vst [vmem:[%s642] sm:$0xf] %v641
    %v644 = vld [vmem:[%s3] sm:$0xff]
    %v645 = vld [vmem:[%s3 + $0x8] sm:$0xff]
    %v646 = vld [vmem:[%s3 + $0x10] sm:$0xff]
    %v647 = vld [vmem:[%s3 + $0x18] sm:$0xff]
    %v648 = vld [vmem:[%s3 + $0x20] sm:$0xff]
    %v649 = vld [vmem:[%s3 + $0x28] sm:$0xff]
    %v650 = vld [vmem:[%s3 + $0x30] sm:$0xff]
    %v651 = vld [vmem:[%s3 + $0x38] sm:$0xff]
    %v652 = vld [vmem:[%s3 + $0x40] sm:$0xff]
    %v653 = vld [vmem:[%s3 + $0x48] sm:$0xff]
    %v654 = vld [vmem:[%s3 + $0x50] sm:$0xff]
    %v655 = vld [vmem:[%s3 + $0x58] sm:$0xff]
    %v656 = vld [vmem:[%s3 + $0x60] sm:$0xff]
    %v657 = vld [vmem:[%s3 + $0x68] sm:$0xff]
    %v658 = vld [vmem:[%s3 + $0x70] sm:$0xff]
    %v659 = vld [vmem:[%s3 + $0x78] sm:$0xff]
    %v660 = vld [vmem:[%s3 + $0x80] sm:$0xff]
    %v661 = vld [vmem:[%s3 + $0x88] sm:$0xff]
    %v662 = vld [vmem:[%s3 + $0x90] sm:$0xff]
    %v663 = vld [vmem:[%s3 + $0x98] sm:$0xff]
    %v664 = vld [vmem:[%s3 + $0xa0] sm:$0xff]
    %v665 = vld [vmem:[%s3 + $0xa8] sm:$0xff]
    %v666 = vld [vmem:[%s3 + $0xb0] sm:$0xff]
    %v667 = vld [vmem:[%s3 + $0xb8] sm:$0xff]
    %v668 = vld [vmem:[%s3 + $0xc0] sm:$0xff]
    %v669 = vld [vmem:[%s3 + $0xc8] sm:$0xff]
    %v670 = vld [vmem:[%s3 + $0xd0] sm:$0xff]
    %v671 = vld [vmem:[%s3 + $0xd8] sm:$0xff]
    %v672 = vld [vmem:[%s3 + $0xe0] sm:$0xff]
    %v673 = vld [vmem:[%s3 + $0xe8] sm:$0xff]
    %v674 = vld [vmem:[%s3 + $0xf0] sm:$0xff]
    %v675 = vld [vmem:[%s3 + $0xf8] sm:$0xff]
    %s676 = scalar_lea.vmem %s0, 64
    %v677 = vld [vmem:[%s676] sm:$0xff]
    %v678 = vld [vmem:[%s676 + $0x8] sm:$0xff]
    %v679 = vld [vmem:[%s676 + $0x10] sm:$0xff]
    %v680 = vld [vmem:[%s676 + $0x18] sm:$0xff]
    %v713 = vunpack.c.l.b16 %v644
    %v714 = vunpack.c.h.b16 %v644
    %v715 = vunpack.c.l.b16 %v645
    %v716 = vunpack.c.h.b16 %v645
    %v717 = vunpack.c.l.b16 %v646
    %v718 = vunpack.c.h.b16 %v646
    %v719 = vunpack.c.l.b16 %v647
    %v720 = vunpack.c.h.b16 %v647
    %v721 = vunpack.c.l.b16 %v648
    %v722 = vunpack.c.h.b16 %v648
    %v723 = vunpack.c.l.b16 %v649
    %v724 = vunpack.c.h.b16 %v649
    %v725 = vunpack.c.l.b16 %v650
    %v726 = vunpack.c.h.b16 %v650
    %v727 = vunpack.c.l.b16 %v651
    %v728 = vunpack.c.h.b16 %v651
    %v729 = vunpack.c.l.b16 %v652
    %v730 = vunpack.c.h.b16 %v652
    %v731 = vunpack.c.l.b16 %v653
    %v732 = vunpack.c.h.b16 %v653
    %v733 = vunpack.c.l.b16 %v654
    %v734 = vunpack.c.h.b16 %v654
    %v735 = vunpack.c.l.b16 %v655
    %v736 = vunpack.c.h.b16 %v655
    %v737 = vunpack.c.l.b16 %v656
    %v738 = vunpack.c.h.b16 %v656
    %v739 = vunpack.c.l.b16 %v657
    %v740 = vunpack.c.h.b16 %v657
    %v741 = vunpack.c.l.b16 %v658
    %v742 = vunpack.c.h.b16 %v658
    %v743 = vunpack.c.l.b16 %v659
    %v744 = vunpack.c.h.b16 %v659
    %v745 = vunpack.c.l.b16 %v660
    %v746 = vunpack.c.h.b16 %v660
    %v747 = vunpack.c.l.b16 %v661
    %v748 = vunpack.c.h.b16 %v661
    %v749 = vunpack.c.l.b16 %v662
    %v750 = vunpack.c.h.b16 %v662
    %v751 = vunpack.c.l.b16 %v663
    %v752 = vunpack.c.h.b16 %v663
    %v753 = vunpack.c.l.b16 %v664
    %v754 = vunpack.c.h.b16 %v664
    %v755 = vunpack.c.l.b16 %v665
    %v756 = vunpack.c.h.b16 %v665
    %v757 = vunpack.c.l.b16 %v666
    %v758 = vunpack.c.h.b16 %v666
    %v759 = vunpack.c.l.b16 %v667
    %v760 = vunpack.c.h.b16 %v667
    %v761 = vunpack.c.l.b16 %v668
    %v762 = vunpack.c.h.b16 %v668
    %v763 = vunpack.c.l.b16 %v669
    %v764 = vunpack.c.h.b16 %v669
    %v765 = vunpack.c.l.b16 %v670
    %v766 = vunpack.c.h.b16 %v670
    %v767 = vunpack.c.l.b16 %v671
    %v768 = vunpack.c.h.b16 %v671
    %v769 = vunpack.c.l.b16 %v672
    %v770 = vunpack.c.h.b16 %v672
    %v771 = vunpack.c.l.b16 %v673
    %v772 = vunpack.c.h.b16 %v673
    %v773 = vunpack.c.l.b16 %v674
    %v774 = vunpack.c.h.b16 %v674
    %v775 = vunpack.c.l.b16 %v675
    %v776 = vunpack.c.h.b16 %v675
    %v777 = vpack.c.b16 %v717, %v713
    %v778 = vpack.c.b16 %v718, %v714
    %v779 = vpack.c.b16 %v719, %v715
    %v780 = vpack.c.b16 %v720, %v716
    %v781 = vpack.c.b16 %v725, %v721
    %v782 = vpack.c.b16 %v726, %v722
    %v783 = vpack.c.b16 %v727, %v723
    %v784 = vpack.c.b16 %v728, %v724
    %v785 = vpack.c.b16 %v733, %v729
    %v786 = vpack.c.b16 %v734, %v730
    %v787 = vpack.c.b16 %v735, %v731
    %v788 = vpack.c.b16 %v736, %v732
    %v789 = vpack.c.b16 %v741, %v737
    %v790 = vpack.c.b16 %v742, %v738
    %v791 = vpack.c.b16 %v743, %v739
    %v792 = vpack.c.b16 %v744, %v740
    %v793 = vpack.c.b16 %v749, %v745
    %v794 = vpack.c.b16 %v750, %v746
    %v795 = vpack.c.b16 %v751, %v747
    %v796 = vpack.c.b16 %v752, %v748
    %v797 = vpack.c.b16 %v757, %v753
    %v798 = vpack.c.b16 %v758, %v754
    %v799 = vpack.c.b16 %v759, %v755
    %v800 = vpack.c.b16 %v760, %v756
    %v801 = vpack.c.b16 %v765, %v761
    %v802 = vpack.c.b16 %v766, %v762
    %v803 = vpack.c.b16 %v767, %v763
    %v804 = vpack.c.b16 %v768, %v764
    %v805 = vpack.c.b16 %v773, %v769
    %v806 = vpack.c.b16 %v774, %v770
    %v807 = vpack.c.b16 %v775, %v771
    %v808 = vpack.c.b16 %v776, %v772
    %841 = vmatprep.subr.bf16.mxu0 %v806
    %842 = vmatpush1.bf16.msra.mxu0 %v805
    %843 = vmatprep.subr.bf16.mxu0 %v802
    %844 = vmatpush1.bf16.msra.mxu0 %v801
    %845 = vmatprep.subr.bf16.mxu0 %v798
    %846 = vmatpush1.bf16.msra.mxu0 %v797
    %847 = vmatprep.subr.bf16.mxu0 %v794
    %848 = vmatpush1.bf16.msra.mxu0 %v793
    %849 = vmatprep.subr.bf16.mxu0 %v790
    %850 = vmatpush1.bf16.msra.mxu0 %v789
    %851 = vmatprep.subr.bf16.mxu0 %v786
    %852 = vmatpush1.bf16.msra.mxu0 %v785
    %853 = vmatprep.subr.bf16.mxu0 %v782
    %854 = vmatpush1.bf16.msra.mxu0 %v781
    %855 = vmatprep.subr.bf16.mxu0 %v778
    %856 = vmatpush1.bf16.msra.mxu0 %v777
    %857 = vmatprep.subr.bf16.mxu0 0
    %858 = vmatpush2.bf16.msra.mxu0 0
    %859 = vmatprep.subr.bf16.mxu0 0
    %860 = vmatpush2.bf16.msra.mxu0 0
    %861 = vmatprep.subr.bf16.mxu0 0
    %862 = vmatpush2.bf16.msra.mxu0 0
    %863 = vmatprep.subr.bf16.mxu0 0
    %864 = vmatpush2.bf16.msra.mxu0 0
    %865 = vmatprep.subr.bf16.mxu0 0
    %866 = vmatpush2.bf16.msra.mxu0 0
    %867 = vmatprep.subr.bf16.mxu0 0
    %868 = vmatpush2.bf16.msra.mxu0 0
    %869 = vmatprep.subr.bf16.mxu0 0
    %870 = vmatpush2.bf16.msra.mxu0 0
    %871 = vmatprep.subr.bf16.mxu0 0
    %872 = vmatpush2.bf16.msra.mxu0 0
    %873 = vmatprep.mubr.bf16.mxu0 0
    %874 = vmatmul.mubr.bf16.gmra.mxu0 %v641
    %v875 = vpop.f32.mrf.mxu0
    %v876 = vadd.f32 %v677, %v875
    %v877 = vpop.f32.mrf.mxu0
    %v878 = vadd.f32 %v678, %v877
    %v879 = vpop.f32.mrf.mxu0
    %v880 = vpop.f32.mrf.mxu0
    %881 = vdwg.mxu0
    %882 = vmatprep.subr.bf16.mxu0 %v808
    %883 = vmatpush1.bf16.msra.mxu0 %v807
    %884 = vmatprep.subr.bf16.mxu0 %v804
    %885 = vmatpush1.bf16.msra.mxu0 %v803
    %886 = vmatprep.subr.bf16.mxu0 %v800
    %887 = vmatpush1.bf16.msra.mxu0 %v799
    %888 = vmatprep.subr.bf16.mxu0 %v796
    %889 = vmatpush1.bf16.msra.mxu0 %v795
    %890 = vmatprep.subr.bf16.mxu0 %v792
    %891 = vmatpush1.bf16.msra.mxu0 %v791
    %892 = vmatprep.subr.bf16.mxu0 %v788
    %893 = vmatpush1.bf16.msra.mxu0 %v787
    %894 = vmatprep.subr.bf16.mxu0 %v784
    %895 = vmatpush1.bf16.msra.mxu0 %v783
    %896 = vmatprep.subr.bf16.mxu0 %v780
    %897 = vmatpush1.bf16.msra.mxu0 %v779
    %898 = vmatprep.subr.bf16.mxu0 0
    %899 = vmatpush2.bf16.msra.mxu0 0
    %900 = vmatprep.subr.bf16.mxu0 0
    %901 = vmatpush2.bf16.msra.mxu0 0
    %902 = vmatprep.subr.bf16.mxu0 0
    %903 = vmatpush2.bf16.msra.mxu0 0
    %904 = vmatprep.subr.bf16.mxu0 0
    %905 = vmatpush2.bf16.msra.mxu0 0
    %906 = vmatprep.subr.bf16.mxu0 0
    %907 = vmatpush2.bf16.msra.mxu0 0
    %908 = vmatprep.subr.bf16.mxu0 0
    %909 = vmatpush2.bf16.msra.mxu0 0
    %910 = vmatprep.subr.bf16.mxu0 0
    %911 = vmatpush2.bf16.msra.mxu0 0
    %912 = vmatprep.subr.bf16.mxu0 0
    %913 = vmatpush2.bf16.msra.mxu0 0
    %914 = vmatprep.mubr.bf16.mxu0 0
    %915 = vmatmul.mubr.bf16.gmra.mxu0 %v641
    %v916 = vpop.f32.mrf.mxu0
    %v917 = vadd.f32 %v679, %v916
    %v918 = vpop.f32.mrf.mxu0
    %v919 = vadd.f32 %v680, %v918
    %v920 = vpop.f32.mrf.mxu0
    %v921 = vpop.f32.mrf.mxu0
    %922 = vdwg.mxu0
    %v923 = vxor.u32 %v917, 2147483648
    %v924 = vmul.f32 %v923, 1.442695
    %v925 = vpow.pop %v924
    %v926 = vadd.f32 %v925, 1.0
    %v927 = vrcp.pop %v926
    %v928 = vmul.f32 1.0, %v927
    %v929 = vmul.f32 %v632, %v928
    %v930 = vxor.u32 %v876, 2147483648
    %v931 = vmul.f32 %v930, 1.442695
    %v932 = vpow.pop %v931
    %v933 = vadd.f32 %v932, 1.0
    %v934 = vrcp.pop %v933
    %v935 = vmul.f32 1.0, %v934
    %v936 = vtanh.pop %v878
    %v937 = vmul.f32 %v935, %v936
    %v938 = vadd.f32 %v929, %v937
    %v939 = vtanh.pop %v938
    %v940 = vxor.u32 %v919, 2147483648
    %v941 = vmul.f32 %v940, 1.442695
    %v942 = vpow.pop %v941
    %v943 = vadd.f32 %v942, 1.0
    %v944 = vrcp.pop %v943
    %v945 = vmul.f32 1.0, %v944
    %v946 = vmul.f32 %v939, %v945
    %v947 = vpack.c.bf16 %v946, %v946
    %s948 = scalar_lea.vmem [#allocation4], 8
    %949 = vst [vmem:[%s948] sm:$0xf] %v947
    %v950 = vld [vmem:[%s3] sm:$0xff]
    %v951 = vld [vmem:[%s3 + $0x8] sm:$0xff]
    %v952 = vld [vmem:[%s3 + $0x10] sm:$0xff]
    %v953 = vld [vmem:[%s3 + $0x18] sm:$0xff]
    %v954 = vld [vmem:[%s3 + $0x20] sm:$0xff]
    %v955 = vld [vmem:[%s3 + $0x28] sm:$0xff]
    %v956 = vld [vmem:[%s3 + $0x30] sm:$0xff]
    %v957 = vld [vmem:[%s3 + $0x38] sm:$0xff]
    %v958 = vld [vmem:[%s3 + $0x40] sm:$0xff]
    %v959 = vld [vmem:[%s3 + $0x48] sm:$0xff]
    %v960 = vld [vmem:[%s3 + $0x50] sm:$0xff]
    %v961 = vld [vmem:[%s3 + $0x58] sm:$0xff]
    %v962 = vld [vmem:[%s3 + $0x60] sm:$0xff]
    %v963 = vld [vmem:[%s3 + $0x68] sm:$0xff]
    %v964 = vld [vmem:[%s3 + $0x70] sm:$0xff]
    %v965 = vld [vmem:[%s3 + $0x78] sm:$0xff]
    %v966 = vld [vmem:[%s3 + $0x80] sm:$0xff]
    %v967 = vld [vmem:[%s3 + $0x88] sm:$0xff]
    %v968 = vld [vmem:[%s3 + $0x90] sm:$0xff]
    %v969 = vld [vmem:[%s3 + $0x98] sm:$0xff]
    %v970 = vld [vmem:[%s3 + $0xa0] sm:$0xff]
    %v971 = vld [vmem:[%s3 + $0xa8] sm:$0xff]
    %v972 = vld [vmem:[%s3 + $0xb0] sm:$0xff]
    %v973 = vld [vmem:[%s3 + $0xb8] sm:$0xff]
    %v974 = vld [vmem:[%s3 + $0xc0] sm:$0xff]
    %v975 = vld [vmem:[%s3 + $0xc8] sm:$0xff]
    %v976 = vld [vmem:[%s3 + $0xd0] sm:$0xff]
    %v977 = vld [vmem:[%s3 + $0xd8] sm:$0xff]
    %v978 = vld [vmem:[%s3 + $0xe0] sm:$0xff]
    %v979 = vld [vmem:[%s3 + $0xe8] sm:$0xff]
    %v980 = vld [vmem:[%s3 + $0xf0] sm:$0xff]
    %v981 = vld [vmem:[%s3 + $0xf8] sm:$0xff]
    %s982 = scalar_lea.vmem %s0, 96
    %v983 = vld [vmem:[%s982] sm:$0xff]
    %v984 = vld [vmem:[%s982 + $0x8] sm:$0xff]
    %v985 = vld [vmem:[%s982 + $0x10] sm:$0xff]
    %v986 = vld [vmem:[%s982 + $0x18] sm:$0xff]
    %v1019 = vunpack.c.l.b16 %v950
    %v1020 = vunpack.c.h.b16 %v950
    %v1021 = vunpack.c.l.b16 %v951
    %v1022 = vunpack.c.h.b16 %v951
    %v1023 = vunpack.c.l.b16 %v952
    %v1024 = vunpack.c.h.b16 %v952
    %v1025 = vunpack.c.l.b16 %v953
    %v1026 = vunpack.c.h.b16 %v953
    %v1027 = vunpack.c.l.b16 %v954
    %v1028 = vunpack.c.h.b16 %v954
    %v1029 = vunpack.c.l.b16 %v955
    %v1030 = vunpack.c.h.b16 %v955
    %v1031 = vunpack.c.l.b16 %v956
    %v1032 = vunpack.c.h.b16 %v956
    %v1033 = vunpack.c.l.b16 %v957
    %v1034 = vunpack.c.h.b16 %v957
    %v1035 = vunpack.c.l.b16 %v958
    %v1036 = vunpack.c.h.b16 %v958
    %v1037 = vunpack.c.l.b16 %v959
    %v1038 = vunpack.c.h.b16 %v959
    %v1039 = vunpack.c.l.b16 %v960
    %v1040 = vunpack.c.h.b16 %v960
    %v1041 = vunpack.c.l.b16 %v961
    %v1042 = vunpack.c.h.b16 %v961
    %v1043 = vunpack.c.l.b16 %v962
    %v1044 = vunpack.c.h.b16 %v962
    %v1045 = vunpack.c.l.b16 %v963
    %v1046 = vunpack.c.h.b16 %v963
    %v1047 = vunpack.c.l.b16 %v964
    %v1048 = vunpack.c.h.b16 %v964
    %v1049 = vunpack.c.l.b16 %v965
    %v1050 = vunpack.c.h.b16 %v965
    %v1051 = vunpack.c.l.b16 %v966
    %v1052 = vunpack.c.h.b16 %v966
    %v1053 = vunpack.c.l.b16 %v967
    %v1054 = vunpack.c.h.b16 %v967
    %v1055 = vunpack.c.l.b16 %v968
    %v1056 = vunpack.c.h.b16 %v968
    %v1057 = vunpack.c.l.b16 %v969
    %v1058 = vunpack.c.h.b16 %v969
    %v1059 = vunpack.c.l.b16 %v970
    %v1060 = vunpack.c.h.b16 %v970
    %v1061 = vunpack.c.l.b16 %v971
    %v1062 = vunpack.c.h.b16 %v971
    %v1063 = vunpack.c.l.b16 %v972
    %v1064 = vunpack.c.h.b16 %v972
    %v1065 = vunpack.c.l.b16 %v973
    %v1066 = vunpack.c.h.b16 %v973
    %v1067 = vunpack.c.l.b16 %v974
    %v1068 = vunpack.c.h.b16 %v974
    %v1069 = vunpack.c.l.b16 %v975
    %v1070 = vunpack.c.h.b16 %v975
    %v1071 = vunpack.c.l.b16 %v976
    %v1072 = vunpack.c.h.b16 %v976
    %v1073 = vunpack.c.l.b16 %v977
    %v1074 = vunpack.c.h.b16 %v977
    %v1075 = vunpack.c.l.b16 %v978
    %v1076 = vunpack.c.h.b16 %v978
    %v1077 = vunpack.c.l.b16 %v979
    %v1078 = vunpack.c.h.b16 %v979
    %v1079 = vunpack.c.l.b16 %v980
    %v1080 = vunpack.c.h.b16 %v980
    %v1081 = vunpack.c.l.b16 %v981
    %v1082 = vunpack.c.h.b16 %v981
    %v1083 = vpack.c.b16 %v1023, %v1019
    %v1084 = vpack.c.b16 %v1024, %v1020
    %v1085 = vpack.c.b16 %v1025, %v1021
    %v1086 = vpack.c.b16 %v1026, %v1022
    %v1087 = vpack.c.b16 %v1031, %v1027
    %v1088 = vpack.c.b16 %v1032, %v1028
    %v1089 = vpack.c.b16 %v1033, %v1029
    %v1090 = vpack.c.b16 %v1034, %v1030
    %v1091 = vpack.c.b16 %v1039, %v1035
    %v1092 = vpack.c.b16 %v1040, %v1036
    %v1093 = vpack.c.b16 %v1041, %v1037
    %v1094 = vpack.c.b16 %v1042, %v1038
    %v1095 = vpack.c.b16 %v1047, %v1043
    %v1096 = vpack.c.b16 %v1048, %v1044
    %v1097 = vpack.c.b16 %v1049, %v1045
    %v1098 = vpack.c.b16 %v1050, %v1046
    %v1099 = vpack.c.b16 %v1055, %v1051
    %v1100 = vpack.c.b16 %v1056, %v1052
    %v1101 = vpack.c.b16 %v1057, %v1053
    %v1102 = vpack.c.b16 %v1058, %v1054
    %v1103 = vpack.c.b16 %v1063, %v1059
    %v1104 = vpack.c.b16 %v1064, %v1060
    %v1105 = vpack.c.b16 %v1065, %v1061
    %v1106 = vpack.c.b16 %v1066, %v1062
    %v1107 = vpack.c.b16 %v1071, %v1067
    %v1108 = vpack.c.b16 %v1072, %v1068
    %v1109 = vpack.c.b16 %v1073, %v1069
    %v1110 = vpack.c.b16 %v1074, %v1070
    %v1111 = vpack.c.b16 %v1079, %v1075
    %v1112 = vpack.c.b16 %v1080, %v1076
    %v1113 = vpack.c.b16 %v1081, %v1077
    %v1114 = vpack.c.b16 %v1082, %v1078
    %1147 = vmatprep.subr.bf16.mxu0 %v1112
    %1148 = vmatpush1.bf16.msra.mxu0 %v1111
    %1149 = vmatprep.subr.bf16.mxu0 %v1108
    %1150 = vmatpush1.bf16.msra.mxu0 %v1107
    %1151 = vmatprep.subr.bf16.mxu0 %v1104
    %1152 = vmatpush1.bf16.msra.mxu0 %v1103
    %1153 = vmatprep.subr.bf16.mxu0 %v1100
    %1154 = vmatpush1.bf16.msra.mxu0 %v1099
    %1155 = vmatprep.subr.bf16.mxu0 %v1096
    %1156 = vmatpush1.bf16.msra.mxu0 %v1095
    %1157 = vmatprep.subr.bf16.mxu0 %v1092
    %1158 = vmatpush1.bf16.msra.mxu0 %v1091
    %1159 = vmatprep.subr.bf16.mxu0 %v1088
    %1160 = vmatpush1.bf16.msra.mxu0 %v1087
    %1161 = vmatprep.subr.bf16.mxu0 %v1084
    %1162 = vmatpush1.bf16.msra.mxu0 %v1083
    %1163 = vmatprep.subr.bf16.mxu0 0
    %1164 = vmatpush2.bf16.msra.mxu0 0
    %1165 = vmatprep.subr.bf16.mxu0 0
    %1166 = vmatpush2.bf16.msra.mxu0 0
    %1167 = vmatprep.subr.bf16.mxu0 0
    %1168 = vmatpush2.bf16.msra.mxu0 0
    %1169 = vmatprep.subr.bf16.mxu0 0
    %1170 = vmatpush2.bf16.msra.mxu0 0
    %1171 = vmatprep.subr.bf16.mxu0 0
    %1172 = vmatpush2.bf16.msra.mxu0 0
    %1173 = vmatprep.subr.bf16.mxu0 0
    %1174 = vmatpush2.bf16.msra.mxu0 0
    %1175 = vmatprep.subr.bf16.mxu0 0
    %1176 = vmatpush2.bf16.msra.mxu0 0
    %1177 = vmatprep.subr.bf16.mxu0 0
    %1178 = vmatpush2.bf16.msra.mxu0 0
    %1179 = vmatprep.mubr.bf16.mxu0 0
    %1180 = vmatmul.mubr.bf16.gmra.mxu0 %v947
    %v1181 = vpop.f32.mrf.mxu0
    %v1182 = vadd.f32 %v983, %v1181
    %v1183 = vpop.f32.mrf.mxu0
    %v1184 = vadd.f32 %v984, %v1183
    %v1185 = vpop.f32.mrf.mxu0
    %v1186 = vpop.f32.mrf.mxu0
    %1187 = vdwg.mxu0
    %1188 = vmatprep.subr.bf16.mxu0 %v1114
    %1189 = vmatpush1.bf16.msra.mxu0 %v1113
    %1190 = vmatprep.subr.bf16.mxu0 %v1110
    %1191 = vmatpush1.bf16.msra.mxu0 %v1109
    %1192 = vmatprep.subr.bf16.mxu0 %v1106
    %1193 = vmatpush1.bf16.msra.mxu0 %v1105
    %1194 = vmatprep.subr.bf16.mxu0 %v1102
    %1195 = vmatpush1.bf16.msra.mxu0 %v1101
    %1196 = vmatprep.subr.bf16.mxu0 %v1098
    %1197 = vmatpush1.bf16.msra.mxu0 %v1097
    %1198 = vmatprep.subr.bf16.mxu0 %v1094
    %1199 = vmatpush1.bf16.msra.mxu0 %v1093
    %1200 = vmatprep.subr.bf16.mxu0 %v1090
    %1201 = vmatpush1.bf16.msra.mxu0 %v1089
    %1202 = vmatprep.subr.bf16.mxu0 %v1086
    %1203 = vmatpush1.bf16.msra.mxu0 %v1085
    %1204 = vmatprep.subr.bf16.mxu0 0
    %1205 = vmatpush2.bf16.msra.mxu0 0
    %1206 = vmatprep.subr.bf16.mxu0 0
    %1207 = vmatpush2.bf16.msra.mxu0 0
    %1208 = vmatprep.subr.bf16.mxu0 0
    %1209 = vmatpush2.bf16.msra.mxu0 0
    %1210 = vmatprep.subr.bf16.mxu0 0
    %1211 = vmatpush2.bf16.msra.mxu0 0
    %1212 = vmatprep.subr.bf16.mxu0 0
    %1213 = vmatpush2.bf16.msra.mxu0 0
    %1214 = vmatprep.subr.bf16.mxu0 0
    %1215 = vmatpush2.bf16.msra.mxu0 0
    %1216 = vmatprep.subr.bf16.mxu0 0
    %1217 = vmatpush2.bf16.msra.mxu0 0
    %1218 = vmatprep.subr.bf16.mxu0 0
    %1219 = vmatpush2.bf16.msra.mxu0 0
    %1220 = vmatprep.mubr.bf16.mxu0 0
    %1221 = vmatmul.mubr.bf16.gmra.mxu0 %v947
    %v1222 = vpop.f32.mrf.mxu0
    %v1223 = vadd.f32 %v985, %v1222
    %v1224 = vpop.f32.mrf.mxu0
    %v1225 = vadd.f32 %v986, %v1224
    %v1226 = vpop.f32.mrf.mxu0
    %v1227 = vpop.f32.mrf.mxu0
    %1228 = vdwg.mxu0
    %v1229 = vxor.u32 %v1223, 2147483648
    %v1230 = vmul.f32 %v1229, 1.442695
    %v1231 = vpow.pop %v1230
    %v1232 = vadd.f32 %v1231, 1.0
    %v1233 = vrcp.pop %v1232
    %v1234 = vmul.f32 1.0, %v1233
    %v1235 = vmul.f32 %v938, %v1234
    %v1236 = vxor.u32 %v1182, 2147483648
    %v1237 = vmul.f32 %v1236, 1.442695
    %v1238 = vpow.pop %v1237
    %v1239 = vadd.f32 %v1238, 1.0
    %v1240 = vrcp.pop %v1239
    %v1241 = vmul.f32 1.0, %v1240
    %v1242 = vtanh.pop %v1184
    %v1243 = vmul.f32 %v1241, %v1242
    %v1244 = vadd.f32 %v1235, %v1243
    %v1245 = vtanh.pop %v1244
    %v1246 = vxor.u32 %v1225, 2147483648
    %v1247 = vmul.f32 %v1246, 1.442695
    %v1248 = vpow.pop %v1247
    %v1249 = vadd.f32 %v1248, 1.0
    %v1250 = vrcp.pop %v1249
    %v1251 = vmul.f32 1.0, %v1250
    %v1252 = vmul.f32 %v1245, %v1251
    %v1253 = vpack.c.bf16 %v1252, %v1252
    %s1254 = scalar_lea.vmem [#allocation4], 12
    %1255 = vst [vmem:[%s1254] sm:$0xf] %v1253
    %v1256 = vld [vmem:[%s3] sm:$0xff]
    %v1257 = vld [vmem:[%s3 + $0x8] sm:$0xff]
    %v1258 = vld [vmem:[%s3 + $0x10] sm:$0xff]
    %v1259 = vld [vmem:[%s3 + $0x18] sm:$0xff]
    %v1260 = vld [vmem:[%s3 + $0x20] sm:$0xff]
    %v1261 = vld [vmem:[%s3 + $0x28] sm:$0xff]
    %v1262 = vld [vmem:[%s3 + $0x30] sm:$0xff]
    %v1263 = vld [vmem:[%s3 + $0x38] sm:$0xff]
    %v1264 = vld [vmem:[%s3 + $0x40] sm:$0xff]
    %v1265 = vld [vmem:[%s3 + $0x48] sm:$0xff]
    %v1266 = vld [vmem:[%s3 + $0x50] sm:$0xff]
    %v1267 = vld [vmem:[%s3 + $0x58] sm:$0xff]
    %v1268 = vld [vmem:[%s3 + $0x60] sm:$0xff]
    %v1269 = vld [vmem:[%s3 + $0x68] sm:$0xff]
    %v1270 = vld [vmem:[%s3 + $0x70] sm:$0xff]
    %v1271 = vld [vmem:[%s3 + $0x78] sm:$0xff]
    %v1272 = vld [vmem:[%s3 + $0x80] sm:$0xff]
    %v1273 = vld [vmem:[%s3 + $0x88] sm:$0xff]
    %v1274 = vld [vmem:[%s3 + $0x90] sm:$0xff]
    %v1275 = vld [vmem:[%s3 + $0x98] sm:$0xff]
    %v1276 = vld [vmem:[%s3 + $0xa0] sm:$0xff]
    %v1277 = vld [vmem:[%s3 + $0xa8] sm:$0xff]
    %v1278 = vld [vmem:[%s3 + $0xb0] sm:$0xff]
    %v1279 = vld [vmem:[%s3 + $0xb8] sm:$0xff]
    %v1280 = vld [vmem:[%s3 + $0xc0] sm:$0xff]
    %v1281 = vld [vmem:[%s3 + $0xc8] sm:$0xff]
    %v1282 = vld [vmem:[%s3 + $0xd0] sm:$0xff]
    %v1283 = vld [vmem:[%s3 + $0xd8] sm:$0xff]
    %v1284 = vld [vmem:[%s3 + $0xe0] sm:$0xff]
    %v1285 = vld [vmem:[%s3 + $0xe8] sm:$0xff]
    %v1286 = vld [vmem:[%s3 + $0xf0] sm:$0xff]
    %v1287 = vld [vmem:[%s3 + $0xf8] sm:$0xff]
    %s1288 = scalar_lea.vmem %s0, 128
    %v1289 = vld [vmem:[%s1288] sm:$0xff]
    %v1290 = vld [vmem:[%s1288 + $0x8] sm:$0xff]
    %v1291 = vld [vmem:[%s1288 + $0x10] sm:$0xff]
    %v1292 = vld [vmem:[%s1288 + $0x18] sm:$0xff]
    %v1325 = vunpack.c.l.b16 %v1256
    %v1326 = vunpack.c.h.b16 %v1256
    %v1327 = vunpack.c.l.b16 %v1257
    %v1328 = vunpack.c.h.b16 %v1257
    %v1329 = vunpack.c.l.b16 %v1258
    %v1330 = vunpack.c.h.b16 %v1258
    %v1331 = vunpack.c.l.b16 %v1259
    %v1332 = vunpack.c.h.b16 %v1259
    %v1333 = vunpack.c.l.b16 %v1260
    %v1334 = vunpack.c.h.b16 %v1260
    %v1335 = vunpack.c.l.b16 %v1261
    %v1336 = vunpack.c.h.b16 %v1261
    %v1337 = vunpack.c.l.b16 %v1262
    %v1338 = vunpack.c.h.b16 %v1262
    %v1339 = vunpack.c.l.b16 %v1263
    %v1340 = vunpack.c.h.b16 %v1263
    %v1341 = vunpack.c.l.b16 %v1264
    %v1342 = vunpack.c.h.b16 %v1264
    %v1343 = vunpack.c.l.b16 %v1265
    %v1344 = vunpack.c.h.b16 %v1265
    %v1345 = vunpack.c.l.b16 %v1266
    %v1346 = vunpack.c.h.b16 %v1266
    %v1347 = vunpack.c.l.b16 %v1267
    %v1348 = vunpack.c.h.b16 %v1267
    %v1349 = vunpack.c.l.b16 %v1268
    %v1350 = vunpack.c.h.b16 %v1268
    %v1351 = vunpack.c.l.b16 %v1269
    %v1352 = vunpack.c.h.b16 %v1269
    %v1353 = vunpack.c.l.b16 %v1270
    %v1354 = vunpack.c.h.b16 %v1270
    %v1355 = vunpack.c.l.b16 %v1271
    %v1356 = vunpack.c.h.b16 %v1271
    %v1357 = vunpack.c.l.b16 %v1272
    %v1358 = vunpack.c.h.b16 %v1272
    %v1359 = vunpack.c.l.b16 %v1273
    %v1360 = vunpack.c.h.b16 %v1273
    %v1361 = vunpack.c.l.b16 %v1274
    %v1362 = vunpack.c.h.b16 %v1274
    %v1363 = vunpack.c.l.b16 %v1275
    %v1364 = vunpack.c.h.b16 %v1275
    %v1365 = vunpack.c.l.b16 %v1276
    %v1366 = vunpack.c.h.b16 %v1276
    %v1367 = vunpack.c.l.b16 %v1277
    %v1368 = vunpack.c.h.b16 %v1277
    %v1369 = vunpack.c.l.b16 %v1278
    %v1370 = vunpack.c.h.b16 %v1278
    %v1371 = vunpack.c.l.b16 %v1279
    %v1372 = vunpack.c.h.b16 %v1279
    %v1373 = vunpack.c.l.b16 %v1280
    %v1374 = vunpack.c.h.b16 %v1280
    %v1375 = vunpack.c.l.b16 %v1281
    %v1376 = vunpack.c.h.b16 %v1281
    %v1377 = vunpack.c.l.b16 %v1282
    %v1378 = vunpack.c.h.b16 %v1282
    %v1379 = vunpack.c.l.b16 %v1283
    %v1380 = vunpack.c.h.b16 %v1283
    %v1381 = vunpack.c.l.b16 %v1284
    %v1382 = vunpack.c.h.b16 %v1284
    %v1383 = vunpack.c.l.b16 %v1285
    %v1384 = vunpack.c.h.b16 %v1285
    %v1385 = vunpack.c.l.b16 %v1286
    %v1386 = vunpack.c.h.b16 %v1286
    %v1387 = vunpack.c.l.b16 %v1287
    %v1388 = vunpack.c.h.b16 %v1287
    %v1389 = vpack.c.b16 %v1329, %v1325
    %v1390 = vpack.c.b16 %v1330, %v1326
    %v1391 = vpack.c.b16 %v1331, %v1327
    %v1392 = vpack.c.b16 %v1332, %v1328
    %v1393 = vpack.c.b16 %v1337, %v1333
    %v1394 = vpack.c.b16 %v1338, %v1334
    %v1395 = vpack.c.b16 %v1339, %v1335
    %v1396 = vpack.c.b16 %v1340, %v1336
    %v1397 = vpack.c.b16 %v1345, %v1341
    %v1398 = vpack.c.b16 %v1346, %v1342
    %v1399 = vpack.c.b16 %v1347, %v1343
    %v1400 = vpack.c.b16 %v1348, %v1344
    %v1401 = vpack.c.b16 %v1353, %v1349
    %v1402 = vpack.c.b16 %v1354, %v1350
    %v1403 = vpack.c.b16 %v1355, %v1351
    %v1404 = vpack.c.b16 %v1356, %v1352
    %v1405 = vpack.c.b16 %v1361, %v1357
    %v1406 = vpack.c.b16 %v1362, %v1358
    %v1407 = vpack.c.b16 %v1363, %v1359
    %v1408 = vpack.c.b16 %v1364, %v1360
    %v1409 = vpack.c.b16 %v1369, %v1365
    %v1410 = vpack.c.b16 %v1370, %v1366
    %v1411 = vpack.c.b16 %v1371, %v1367
    %v1412 = vpack.c.b16 %v1372, %v1368
    %v1413 = vpack.c.b16 %v1377, %v1373
    %v1414 = vpack.c.b16 %v1378, %v1374
    %v1415 = vpack.c.b16 %v1379, %v1375
    %v1416 = vpack.c.b16 %v1380, %v1376
    %v1417 = vpack.c.b16 %v1385, %v1381
    %v1418 = vpack.c.b16 %v1386, %v1382
    %v1419 = vpack.c.b16 %v1387, %v1383
    %v1420 = vpack.c.b16 %v1388, %v1384
    %1453 = vmatprep.subr.bf16.mxu0 %v1418
    %1454 = vmatpush1.bf16.msra.mxu0 %v1417
    %1455 = vmatprep.subr.bf16.mxu0 %v1414
    %1456 = vmatpush1.bf16.msra.mxu0 %v1413
    %1457 = vmatprep.subr.bf16.mxu0 %v1410
    %1458 = vmatpush1.bf16.msra.mxu0 %v1409
    %1459 = vmatprep.subr.bf16.mxu0 %v1406
    %1460 = vmatpush1.bf16.msra.mxu0 %v1405
    %1461 = vmatprep.subr.bf16.mxu0 %v1402
    %1462 = vmatpush1.bf16.msra.mxu0 %v1401
    %1463 = vmatprep.subr.bf16.mxu0 %v1398
    %1464 = vmatpush1.bf16.msra.mxu0 %v1397
    %1465 = vmatprep.subr.bf16.mxu0 %v1394
    %1466 = vmatpush1.bf16.msra.mxu0 %v1393
    %1467 = vmatprep.subr.bf16.mxu0 %v1390
    %1468 = vmatpush1.bf16.msra.mxu0 %v1389
    %1469 = vmatprep.subr.bf16.mxu0 0
    %1470 = vmatpush2.bf16.msra.mxu0 0
    %1471 = vmatprep.subr.bf16.mxu0 0
    %1472 = vmatpush2.bf16.msra.mxu0 0
    %1473 = vmatprep.subr.bf16.mxu0 0
    %1474 = vmatpush2.bf16.msra.mxu0 0
    %1475 = vmatprep.subr.bf16.mxu0 0
    %1476 = vmatpush2.bf16.msra.mxu0 0
    %1477 = vmatprep.subr.bf16.mxu0 0
    %1478 = vmatpush2.bf16.msra.mxu0 0
    %1479 = vmatprep.subr.bf16.mxu0 0
    %1480 = vmatpush2.bf16.msra.mxu0 0
    %1481 = vmatprep.subr.bf16.mxu0 0
    %1482 = vmatpush2.bf16.msra.mxu0 0
    %1483 = vmatprep.subr.bf16.mxu0 0
    %1484 = vmatpush2.bf16.msra.mxu0 0
    %1485 = vmatprep.mubr.bf16.mxu0 0
    %1486 = vmatmul.mubr.bf16.gmra.mxu0 %v1253
    %v1487 = vpop.f32.mrf.mxu0
    %v1488 = vadd.f32 %v1289, %v1487
    %v1489 = vpop.f32.mrf.mxu0
    %v1490 = vadd.f32 %v1290, %v1489
    %v1491 = vpop.f32.mrf.mxu0
    %v1492 = vpop.f32.mrf.mxu0
    %1493 = vdwg.mxu0
    %1494 = vmatprep.subr.bf16.mxu0 %v1420
    %1495 = vmatpush1.bf16.msra.mxu0 %v1419
    %1496 = vmatprep.subr.bf16.mxu0 %v1416
    %1497 = vmatpush1.bf16.msra.mxu0 %v1415
    %1498 = vmatprep.subr.bf16.mxu0 %v1412
    %1499 = vmatpush1.bf16.msra.mxu0 %v1411
    %1500 = vmatprep.subr.bf16.mxu0 %v1408
    %1501 = vmatpush1.bf16.msra.mxu0 %v1407
    %1502 = vmatprep.subr.bf16.mxu0 %v1404
    %1503 = vmatpush1.bf16.msra.mxu0 %v1403
    %1504 = vmatprep.subr.bf16.mxu0 %v1400
    %1505 = vmatpush1.bf16.msra.mxu0 %v1399
    %1506 = vmatprep.subr.bf16.mxu0 %v1396
    %1507 = vmatpush1.bf16.msra.mxu0 %v1395
    %1508 = vmatprep.subr.bf16.mxu0 %v1392
    %1509 = vmatpush1.bf16.msra.mxu0 %v1391
    %1510 = vmatprep.subr.bf16.mxu0 0
    %1511 = vmatpush2.bf16.msra.mxu0 0
    %1512 = vmatprep.subr.bf16.mxu0 0
    %1513 = vmatpush2.bf16.msra.mxu0 0
    %1514 = vmatprep.subr.bf16.mxu0 0
    %1515 = vmatpush2.bf16.msra.mxu0 0
    %1516 = vmatprep.subr.bf16.mxu0 0
    %1517 = vmatpush2.bf16.msra.mxu0 0
    %1518 = vmatprep.subr.bf16.mxu0 0
    %1519 = vmatpush2.bf16.msra.mxu0 0
    %1520 = vmatprep.subr.bf16.mxu0 0
    %1521 = vmatpush2.bf16.msra.mxu0 0
    %1522 = vmatprep.subr.bf16.mxu0 0
    %1523 = vmatpush2.bf16.msra.mxu0 0
    %1524 = vmatprep.subr.bf16.mxu0 0
    %1525 = vmatpush2.bf16.msra.mxu0 0
    %1526 = vmatprep.mubr.bf16.mxu0 0
    %1527 = vmatmul.mubr.bf16.gmra.mxu0 %v1253
    %v1528 = vpop.f32.mrf.mxu0
    %v1529 = vadd.f32 %v1291, %v1528
    %v1530 = vpop.f32.mrf.mxu0
    %v1531 = vadd.f32 %v1292, %v1530
    %v1532 = vpop.f32.mrf.mxu0
    %v1533 = vpop.f32.mrf.mxu0
    %1534 = vdwg.mxu0
    %v1535 = vxor.u32 %v1529, 2147483648
    %v1536 = vmul.f32 %v1535, 1.442695
    %v1537 = vpow.pop %v1536
    %v1538 = vadd.f32 %v1537, 1.0
    %v1539 = vrcp.pop %v1538
    %v1540 = vmul.f32 1.0, %v1539
    %v1541 = vmul.f32 %v1244, %v1540
    %v1542 = vxor.u32 %v1488, 2147483648
    %v1543 = vmul.f32 %v1542, 1.442695
    %v1544 = vpow.pop %v1543
    %v1545 = vadd.f32 %v1544, 1.0
    %v1546 = vrcp.pop %v1545
    %v1547 = vmul.f32 1.0, %v1546
    %v1548 = vtanh.pop %v1490
    %v1549 = vmul.f32 %v1547, %v1548
    %v1550 = vadd.f32 %v1541, %v1549
    %v1551 = vtanh.pop %v1550
    %v1552 = vxor.u32 %v1531, 2147483648
    %v1553 = vmul.f32 %v1552, 1.442695
    %v1554 = vpow.pop %v1553
    %v1555 = vadd.f32 %v1554, 1.0
    %v1556 = vrcp.pop %v1555
    %v1557 = vmul.f32 1.0, %v1556
    %v1558 = vmul.f32 %v1551, %v1557
    %v1559 = vpack.c.bf16 %v1558, %v1558
    %s1560 = scalar_lea.vmem [#allocation4], 16
    %1561 = vst [vmem:[%s1560] sm:$0xf] %v1559
    %v1562 = vld [vmem:[%s3] sm:$0xff]
    %v1563 = vld [vmem:[%s3 + $0x8] sm:$0xff]
    %v1564 = vld [vmem:[%s3 + $0x10] sm:$0xff]
    %v1565 = vld [vmem:[%s3 + $0x18] sm:$0xff]
    %v1566 = vld [vmem:[%s3 + $0x20] sm:$0xff]
    %v1567 = vld [vmem:[%s3 + $0x28] sm:$0xff]
    %v1568 = vld [vmem:[%s3 + $0x30] sm:$0xff]
    %v1569 = vld [vmem:[%s3 + $0x38] sm:$0xff]
    %v1570 = vld [vmem:[%s3 + $0x40] sm:$0xff]
    %v1571 = vld [vmem:[%s3 + $0x48] sm:$0xff]
    %v1572 = vld [vmem:[%s3 + $0x50] sm:$0xff]
    %v1573 = vld [vmem:[%s3 + $0x58] sm:$0xff]
    %v1574 = vld [vmem:[%s3 + $0x60] sm:$0xff]
    %v1575 = vld [vmem:[%s3 + $0x68] sm:$0xff]
    %v1576 = vld [vmem:[%s3 + $0x70] sm:$0xff]
    %v1577 = vld [vmem:[%s3 + $0x78] sm:$0xff]
    %v1578 = vld [vmem:[%s3 + $0x80] sm:$0xff]
    %v1579 = vld [vmem:[%s3 + $0x88] sm:$0xff]
    %v1580 = vld [vmem:[%s3 + $0x90] sm:$0xff]
    %v1581 = vld [vmem:[%s3 + $0x98] sm:$0xff]
    %v1582 = vld [vmem:[%s3 + $0xa0] sm:$0xff]
    %v1583 = vld [vmem:[%s3 + $0xa8] sm:$0xff]
    %v1584 = vld [vmem:[%s3 + $0xb0] sm:$0xff]
    %v1585 = vld [vmem:[%s3 + $0xb8] sm:$0xff]
    %v1586 = vld [vmem:[%s3 + $0xc0] sm:$0xff]
    %v1587 = vld [vmem:[%s3 + $0xc8] sm:$0xff]
    %v1588 = vld [vmem:[%s3 + $0xd0] sm:$0xff]
    %v1589 = vld [vmem:[%s3 + $0xd8] sm:$0xff]
    %v1590 = vld [vmem:[%s3 + $0xe0] sm:$0xff]
    %v1591 = vld [vmem:[%s3 + $0xe8] sm:$0xff]
    %v1592 = vld [vmem:[%s3 + $0xf0] sm:$0xff]
    %v1593 = vld [vmem:[%s3 + $0xf8] sm:$0xff]
    %s1594 = scalar_lea.vmem %s0, 160
    %v1595 = vld [vmem:[%s1594] sm:$0xff]
    %v1596 = vld [vmem:[%s1594 + $0x8] sm:$0xff]
    %v1597 = vld [vmem:[%s1594 + $0x10] sm:$0xff]
    %v1598 = vld [vmem:[%s1594 + $0x18] sm:$0xff]
    %v1631 = vunpack.c.l.b16 %v1562
    %v1632 = vunpack.c.h.b16 %v1562
    %v1633 = vunpack.c.l.b16 %v1563
    %v1634 = vunpack.c.h.b16 %v1563
    %v1635 = vunpack.c.l.b16 %v1564
    %v1636 = vunpack.c.h.b16 %v1564
    %v1637 = vunpack.c.l.b16 %v1565
    %v1638 = vunpack.c.h.b16 %v1565
    %v1639 = vunpack.c.l.b16 %v1566
    %v1640 = vunpack.c.h.b16 %v1566
    %v1641 = vunpack.c.l.b16 %v1567
    %v1642 = vunpack.c.h.b16 %v1567
    %v1643 = vunpack.c.l.b16 %v1568
    %v1644 = vunpack.c.h.b16 %v1568
    %v1645 = vunpack.c.l.b16 %v1569
    %v1646 = vunpack.c.h.b16 %v1569
    %v1647 = vunpack.c.l.b16 %v1570
    %v1648 = vunpack.c.h.b16 %v1570
    %v1649 = vunpack.c.l.b16 %v1571
    %v1650 = vunpack.c.h.b16 %v1571
    %v1651 = vunpack.c.l.b16 %v1572
    %v1652 = vunpack.c.h.b16 %v1572
    %v1653 = vunpack.c.l.b16 %v1573
    %v1654 = vunpack.c.h.b16 %v1573
    %v1655 = vunpack.c.l.b16 %v1574
    %v1656 = vunpack.c.h.b16 %v1574
    %v1657 = vunpack.c.l.b16 %v1575
    %v1658 = vunpack.c.h.b16 %v1575
    %v1659 = vunpack.c.l.b16 %v1576
    %v1660 = vunpack.c.h.b16 %v1576
    %v1661 = vunpack.c.l.b16 %v1577
    %v1662 = vunpack.c.h.b16 %v1577
    %v1663 = vunpack.c.l.b16 %v1578
    %v1664 = vunpack.c.h.b16 %v1578
    %v1665 = vunpack.c.l.b16 %v1579
    %v1666 = vunpack.c.h.b16 %v1579
    %v1667 = vunpack.c.l.b16 %v1580
    %v1668 = vunpack.c.h.b16 %v1580
    %v1669 = vunpack.c.l.b16 %v1581
    %v1670 = vunpack.c.h.b16 %v1581
    %v1671 = vunpack.c.l.b16 %v1582
    %v1672 = vunpack.c.h.b16 %v1582
    %v1673 = vunpack.c.l.b16 %v1583
    %v1674 = vunpack.c.h.b16 %v1583
    %v1675 = vunpack.c.l.b16 %v1584
    %v1676 = vunpack.c.h.b16 %v1584
    %v1677 = vunpack.c.l.b16 %v1585
    %v1678 = vunpack.c.h.b16 %v1585
    %v1679 = vunpack.c.l.b16 %v1586
    %v1680 = vunpack.c.h.b16 %v1586
    %v1681 = vunpack.c.l.b16 %v1587
    %v1682 = vunpack.c.h.b16 %v1587
    %v1683 = vunpack.c.l.b16 %v1588
    %v1684 = vunpack.c.h.b16 %v1588
    %v1685 = vunpack.c.l.b16 %v1589
    %v1686 = vunpack.c.h.b16 %v1589
    %v1687 = vunpack.c.l.b16 %v1590
    %v1688 = vunpack.c.h.b16 %v1590
    %v1689 = vunpack.c.l.b16 %v1591
    %v1690 = vunpack.c.h.b16 %v1591
    %v1691 = vunpack.c.l.b16 %v1592
    %v1692 = vunpack.c.h.b16 %v1592
    %v1693 = vunpack.c.l.b16 %v1593
    %v1694 = vunpack.c.h.b16 %v1593
    %v1695 = vpack.c.b16 %v1635, %v1631
    %v1696 = vpack.c.b16 %v1636, %v1632
    %v1697 = vpack.c.b16 %v1637, %v1633
    %v1698 = vpack.c.b16 %v1638, %v1634
    %v1699 = vpack.c.b16 %v1643, %v1639
    %v1700 = vpack.c.b16 %v1644, %v1640
    %v1701 = vpack.c.b16 %v1645, %v1641
    %v1702 = vpack.c.b16 %v1646, %v1642
    %v1703 = vpack.c.b16 %v1651, %v1647
    %v1704 = vpack.c.b16 %v1652, %v1648
    %v1705 = vpack.c.b16 %v1653, %v1649
    %v1706 = vpack.c.b16 %v1654, %v1650
    %v1707 = vpack.c.b16 %v1659, %v1655
    %v1708 = vpack.c.b16 %v1660, %v1656
    %v1709 = vpack.c.b16 %v1661, %v1657
    %v1710 = vpack.c.b16 %v1662, %v1658
    %v1711 = vpack.c.b16 %v1667, %v1663
    %v1712 = vpack.c.b16 %v1668, %v1664
    %v1713 = vpack.c.b16 %v1669, %v1665
    %v1714 = vpack.c.b16 %v1670, %v1666
    %v1715 = vpack.c.b16 %v1675, %v1671
    %v1716 = vpack.c.b16 %v1676, %v1672
    %v1717 = vpack.c.b16 %v1677, %v1673
    %v1718 = vpack.c.b16 %v1678, %v1674
    %v1719 = vpack.c.b16 %v1683, %v1679
    %v1720 = vpack.c.b16 %v1684, %v1680
    %v1721 = vpack.c.b16 %v1685, %v1681
    %v1722 = vpack.c.b16 %v1686, %v1682
    %v1723 = vpack.c.b16 %v1691, %v1687
    %v1724 = vpack.c.b16 %v1692, %v1688
    %v1725 = vpack.c.b16 %v1693, %v1689
    %v1726 = vpack.c.b16 %v1694, %v1690
    %1759 = vmatprep.subr.bf16.mxu0 %v1724
    %1760 = vmatpush1.bf16.msra.mxu0 %v1723
    %1761 = vmatprep.subr.bf16.mxu0 %v1720
    %1762 = vmatpush1.bf16.msra.mxu0 %v1719
    %1763 = vmatprep.subr.bf16.mxu0 %v1716
    %1764 = vmatpush1.bf16.msra.mxu0 %v1715
    %1765 = vmatprep.subr.bf16.mxu0 %v1712
    %1766 = vmatpush1.bf16.msra.mxu0 %v1711
    %1767 = vmatprep.subr.bf16.mxu0 %v1708
    %1768 = vmatpush1.bf16.msra.mxu0 %v1707
    %1769 = vmatprep.subr.bf16.mxu0 %v1704
    %1770 = vmatpush1.bf16.msra.mxu0 %v1703
    %1771 = vmatprep.subr.bf16.mxu0 %v1700
    %1772 = vmatpush1.bf16.msra.mxu0 %v1699
    %1773 = vmatprep.subr.bf16.mxu0 %v1696
    %1774 = vmatpush1.bf16.msra.mxu0 %v1695
    %1775 = vmatprep.subr.bf16.mxu0 0
    %1776 = vmatpush2.bf16.msra.mxu0 0
    %1777 = vmatprep.subr.bf16.mxu0 0
    %1778 = vmatpush2.bf16.msra.mxu0 0
    %1779 = vmatprep.subr.bf16.mxu0 0
    %1780 = vmatpush2.bf16.msra.mxu0 0
    %1781 = vmatprep.subr.bf16.mxu0 0
    %1782 = vmatpush2.bf16.msra.mxu0 0
    %1783 = vmatprep.subr.bf16.mxu0 0
    %1784 = vmatpush2.bf16.msra.mxu0 0
    %1785 = vmatprep.subr.bf16.mxu0 0
    %1786 = vmatpush2.bf16.msra.mxu0 0
    %1787 = vmatprep.subr.bf16.mxu0 0
    %1788 = vmatpush2.bf16.msra.mxu0 0
    %1789 = vmatprep.subr.bf16.mxu0 0
    %1790 = vmatpush2.bf16.msra.mxu0 0
    %1791 = vmatprep.mubr.bf16.mxu0 0
    %1792 = vmatmul.mubr.bf16.gmra.mxu0 %v1559
    %v1793 = vpop.f32.mrf.mxu0
    %v1794 = vadd.f32 %v1595, %v1793
    %v1795 = vpop.f32.mrf.mxu0
    %v1796 = vadd.f32 %v1596, %v1795
    %v1797 = vpop.f32.mrf.mxu0
    %v1798 = vpop.f32.mrf.mxu0
    %1799 = vdwg.mxu0
    %1800 = vmatprep.subr.bf16.mxu0 %v1726
    %1801 = vmatpush1.bf16.msra.mxu0 %v1725
    %1802 = vmatprep.subr.bf16.mxu0 %v1722
    %1803 = vmatpush1.bf16.msra.mxu0 %v1721
    %1804 = vmatprep.subr.bf16.mxu0 %v1718
    %1805 = vmatpush1.bf16.msra.mxu0 %v1717
    %1806 = vmatprep.subr.bf16.mxu0 %v1714
    %1807 = vmatpush1.bf16.msra.mxu0 %v1713
    %1808 = vmatprep.subr.bf16.mxu0 %v1710
    %1809 = vmatpush1.bf16.msra.mxu0 %v1709
    %1810 = vmatprep.subr.bf16.mxu0 %v1706
    %1811 = vmatpush1.bf16.msra.mxu0 %v1705
    %1812 = vmatprep.subr.bf16.mxu0 %v1702
    %1813 = vmatpush1.bf16.msra.mxu0 %v1701
    %1814 = vmatprep.subr.bf16.mxu0 %v1698
    %1815 = vmatpush1.bf16.msra.mxu0 %v1697
    %1816 = vmatprep.subr.bf16.mxu0 0
    %1817 = vmatpush2.bf16.msra.mxu0 0
    %1818 = vmatprep.subr.bf16.mxu0 0
    %1819 = vmatpush2.bf16.msra.mxu0 0
    %1820 = vmatprep.subr.bf16.mxu0 0
    %1821 = vmatpush2.bf16.msra.mxu0 0
    %1822 = vmatprep.subr.bf16.mxu0 0
    %1823 = vmatpush2.bf16.msra.mxu0 0
    %1824 = vmatprep.subr.bf16.mxu0 0
    %1825 = vmatpush2.bf16.msra.mxu0 0
    %1826 = vmatprep.subr.bf16.mxu0 0
    %1827 = vmatpush2.bf16.msra.mxu0 0
    %1828 = vmatprep.subr.bf16.mxu0 0
    %1829 = vmatpush2.bf16.msra.mxu0 0
    %1830 = vmatprep.subr.bf16.mxu0 0
    %1831 = vmatpush2.bf16.msra.mxu0 0
    %1832 = vmatprep.mubr.bf16.mxu0 0
    %1833 = vmatmul.mubr.bf16.gmra.mxu0 %v1559
    %v1834 = vpop.f32.mrf.mxu0
    %v1835 = vadd.f32 %v1597, %v1834
    %v1836 = vpop.f32.mrf.mxu0
    %v1837 = vadd.f32 %v1598, %v1836
    %v1838 = vpop.f32.mrf.mxu0
    %v1839 = vpop.f32.mrf.mxu0
    %1840 = vdwg.mxu0
    %v1841 = vxor.u32 %v1835, 2147483648
    %v1842 = vmul.f32 %v1841, 1.442695
    %v1843 = vpow.pop %v1842
    %v1844 = vadd.f32 %v1843, 1.0
    %v1845 = vrcp.pop %v1844
    %v1846 = vmul.f32 1.0, %v1845
    %v1847 = vmul.f32 %v1550, %v1846
    %v1848 = vxor.u32 %v1794, 2147483648
    %v1849 = vmul.f32 %v1848, 1.442695
    %v1850 = vpow.pop %v1849
    %v1851 = vadd.f32 %v1850, 1.0
    %v1852 = vrcp.pop %v1851
    %v1853 = vmul.f32 1.0, %v1852
    %v1854 = vtanh.pop %v1796
    %v1855 = vmul.f32 %v1853, %v1854
    %v1856 = vadd.f32 %v1847, %v1855
    %v1857 = vtanh.pop %v1856
    %v1858 = vxor.u32 %v1837, 2147483648
    %v1859 = vmul.f32 %v1858, 1.442695
    %v1860 = vpow.pop %v1859
    %v1861 = vadd.f32 %v1860, 1.0
    %v1862 = vrcp.pop %v1861
    %v1863 = vmul.f32 1.0, %v1862
    %v1864 = vmul.f32 %v1857, %v1863
    %v1865 = vpack.c.bf16 %v1864, %v1864
    %s1866 = scalar_lea.vmem [#allocation4], 20
    %1867 = vst [vmem:[%s1866] sm:$0xf] %v1865
    %v1868 = vld [vmem:[%s3] sm:$0xff]
    %v1869 = vld [vmem:[%s3 + $0x8] sm:$0xff]
    %v1870 = vld [vmem:[%s3 + $0x10] sm:$0xff]
    %v1871 = vld [vmem:[%s3 + $0x18] sm:$0xff]
    %v1872 = vld [vmem:[%s3 + $0x20] sm:$0xff]
    %v1873 = vld [vmem:[%s3 + $0x28] sm:$0xff]
    %v1874 = vld [vmem:[%s3 + $0x30] sm:$0xff]
    %v1875 = vld [vmem:[%s3 + $0x38] sm:$0xff]
    %v1876 = vld [vmem:[%s3 + $0x40] sm:$0xff]
    %v1877 = vld [vmem:[%s3 + $0x48] sm:$0xff]
    %v1878 = vld [vmem:[%s3 + $0x50] sm:$0xff]
    %v1879 = vld [vmem:[%s3 + $0x58] sm:$0xff]
    %v1880 = vld [vmem:[%s3 + $0x60] sm:$0xff]
    %v1881 = vld [vmem:[%s3 + $0x68] sm:$0xff]
    %v1882 = vld [vmem:[%s3 + $0x70] sm:$0xff]
    %v1883 = vld [vmem:[%s3 + $0x78] sm:$0xff]
    %v1884 = vld [vmem:[%s3 + $0x80] sm:$0xff]
    %v1885 = vld [vmem:[%s3 + $0x88] sm:$0xff]
    %v1886 = vld [vmem:[%s3 + $0x90] sm:$0xff]
    %v1887 = vld [vmem:[%s3 + $0x98] sm:$0xff]
    %v1888 = vld [vmem:[%s3 + $0xa0] sm:$0xff]
    %v1889 = vld [vmem:[%s3 + $0xa8] sm:$0xff]
    %v1890 = vld [vmem:[%s3 + $0xb0] sm:$0xff]
    %v1891 = vld [vmem:[%s3 + $0xb8] sm:$0xff]
    %v1892 = vld [vmem:[%s3 + $0xc0] sm:$0xff]
    %v1893 = vld [vmem:[%s3 + $0xc8] sm:$0xff]
    %v1894 = vld [vmem:[%s3 + $0xd0] sm:$0xff]
    %v1895 = vld [vmem:[%s3 + $0xd8] sm:$0xff]
    %v1896 = vld [vmem:[%s3 + $0xe0] sm:$0xff]
    %v1897 = vld [vmem:[%s3 + $0xe8] sm:$0xff]
    %v1898 = vld [vmem:[%s3 + $0xf0] sm:$0xff]
    %v1899 = vld [vmem:[%s3 + $0xf8] sm:$0xff]
    %s1900 = scalar_lea.vmem %s0, 192
    %v1901 = vld [vmem:[%s1900] sm:$0xff]
    %v1902 = vld [vmem:[%s1900 + $0x8] sm:$0xff]
    %v1903 = vld [vmem:[%s1900 + $0x10] sm:$0xff]
    %v1904 = vld [vmem:[%s1900 + $0x18] sm:$0xff]
    %v1937 = vunpack.c.l.b16 %v1868
    %v1938 = vunpack.c.h.b16 %v1868
    %v1939 = vunpack.c.l.b16 %v1869
    %v1940 = vunpack.c.h.b16 %v1869
    %v1941 = vunpack.c.l.b16 %v1870
    %v1942 = vunpack.c.h.b16 %v1870
    %v1943 = vunpack.c.l.b16 %v1871
    %v1944 = vunpack.c.h.b16 %v1871
    %v1945 = vunpack.c.l.b16 %v1872
    %v1946 = vunpack.c.h.b16 %v1872
    %v1947 = vunpack.c.l.b16 %v1873
    %v1948 = vunpack.c.h.b16 %v1873
    %v1949 = vunpack.c.l.b16 %v1874
    %v1950 = vunpack.c.h.b16 %v1874
    %v1951 = vunpack.c.l.b16 %v1875
    %v1952 = vunpack.c.h.b16 %v1875
    %v1953 = vunpack.c.l.b16 %v1876
    %v1954 = vunpack.c.h.b16 %v1876
    %v1955 = vunpack.c.l.b16 %v1877
    %v1956 = vunpack.c.h.b16 %v1877
    %v1957 = vunpack.c.l.b16 %v1878
    %v1958 = vunpack.c.h.b16 %v1878
    %v1959 = vunpack.c.l.b16 %v1879
    %v1960 = vunpack.c.h.b16 %v1879
    %v1961 = vunpack.c.l.b16 %v1880
    %v1962 = vunpack.c.h.b16 %v1880
    %v1963 = vunpack.c.l.b16 %v1881
    %v1964 = vunpack.c.h.b16 %v1881
    %v1965 = vunpack.c.l.b16 %v1882
    %v1966 = vunpack.c.h.b16 %v1882
    %v1967 = vunpack.c.l.b16 %v1883
    %v1968 = vunpack.c.h.b16 %v1883
    %v1969 = vunpack.c.l.b16 %v1884
    %v1970 = vunpack.c.h.b16 %v1884
    %v1971 = vunpack.c.l.b16 %v1885
    %v1972 = vunpack.c.h.b16 %v1885
    %v1973 = vunpack.c.l.b16 %v1886
    %v1974 = vunpack.c.h.b16 %v1886
    %v1975 = vunpack.c.l.b16 %v1887
    %v1976 = vunpack.c.h.b16 %v1887
    %v1977 = vunpack.c.l.b16 %v1888
    %v1978 = vunpack.c.h.b16 %v1888
    %v1979 = vunpack.c.l.b16 %v1889
    %v1980 = vunpack.c.h.b16 %v1889
    %v1981 = vunpack.c.l.b16 %v1890
    %v1982 = vunpack.c.h.b16 %v1890
    %v1983 = vunpack.c.l.b16 %v1891
    %v1984 = vunpack.c.h.b16 %v1891
    %v1985 = vunpack.c.l.b16 %v1892
    %v1986 = vunpack.c.h.b16 %v1892
    %v1987 = vunpack.c.l.b16 %v1893
    %v1988 = vunpack.c.h.b16 %v1893
    %v1989 = vunpack.c.l.b16 %v1894
    %v1990 = vunpack.c.h.b16 %v1894
    %v1991 = vunpack.c.l.b16 %v1895
    %v1992 = vunpack.c.h.b16 %v1895
    %v1993 = vunpack.c.l.b16 %v1896
    %v1994 = vunpack.c.h.b16 %v1896
    %v1995 = vunpack.c.l.b16 %v1897
    %v1996 = vunpack.c.h.b16 %v1897
    %v1997 = vunpack.c.l.b16 %v1898
    %v1998 = vunpack.c.h.b16 %v1898
    %v1999 = vunpack.c.l.b16 %v1899
    %v2000 = vunpack.c.h.b16 %v1899
    %v2001 = vpack.c.b16 %v1941, %v1937
    %v2002 = vpack.c.b16 %v1942, %v1938
    %v2003 = vpack.c.b16 %v1943, %v1939
    %v2004 = vpack.c.b16 %v1944, %v1940
    %v2005 = vpack.c.b16 %v1949, %v1945
    %v2006 = vpack.c.b16 %v1950, %v1946
    %v2007 = vpack.c.b16 %v1951, %v1947
    %v2008 = vpack.c.b16 %v1952, %v1948
    %v2009 = vpack.c.b16 %v1957, %v1953
    %v2010 = vpack.c.b16 %v1958, %v1954
    %v2011 = vpack.c.b16 %v1959, %v1955
    %v2012 = vpack.c.b16 %v1960, %v1956
    %v2013 = vpack.c.b16 %v1965, %v1961
    %v2014 = vpack.c.b16 %v1966, %v1962
    %v2015 = vpack.c.b16 %v1967, %v1963
    %v2016 = vpack.c.b16 %v1968, %v1964
    %v2017 = vpack.c.b16 %v1973, %v1969
    %v2018 = vpack.c.b16 %v1974, %v1970
    %v2019 = vpack.c.b16 %v1975, %v1971
    %v2020 = vpack.c.b16 %v1976, %v1972
    %v2021 = vpack.c.b16 %v1981, %v1977
    %v2022 = vpack.c.b16 %v1982, %v1978
    %v2023 = vpack.c.b16 %v1983, %v1979
    %v2024 = vpack.c.b16 %v1984, %v1980
    %v2025 = vpack.c.b16 %v1989, %v1985
    %v2026 = vpack.c.b16 %v1990, %v1986
    %v2027 = vpack.c.b16 %v1991, %v1987
    %v2028 = vpack.c.b16 %v1992, %v1988
    %v2029 = vpack.c.b16 %v1997, %v1993
    %v2030 = vpack.c.b16 %v1998, %v1994
    %v2031 = vpack.c.b16 %v1999, %v1995
    %v2032 = vpack.c.b16 %v2000, %v1996
    %2065 = vmatprep.subr.bf16.mxu0 %v2030
    %2066 = vmatpush1.bf16.msra.mxu0 %v2029
    %2067 = vmatprep.subr.bf16.mxu0 %v2026
    %2068 = vmatpush1.bf16.msra.mxu0 %v2025
    %2069 = vmatprep.subr.bf16.mxu0 %v2022
    %2070 = vmatpush1.bf16.msra.mxu0 %v2021
    %2071 = vmatprep.subr.bf16.mxu0 %v2018
    %2072 = vmatpush1.bf16.msra.mxu0 %v2017
    %2073 = vmatprep.subr.bf16.mxu0 %v2014
    %2074 = vmatpush1.bf16.msra.mxu0 %v2013
    %2075 = vmatprep.subr.bf16.mxu0 %v2010
    %2076 = vmatpush1.bf16.msra.mxu0 %v2009
    %2077 = vmatprep.subr.bf16.mxu0 %v2006
    %2078 = vmatpush1.bf16.msra.mxu0 %v2005
    %2079 = vmatprep.subr.bf16.mxu0 %v2002
    %2080 = vmatpush1.bf16.msra.mxu0 %v2001
    %2081 = vmatprep.subr.bf16.mxu0 0
    %2082 = vmatpush2.bf16.msra.mxu0 0
    %2083 = vmatprep.subr.bf16.mxu0 0
    %2084 = vmatpush2.bf16.msra.mxu0 0
    %2085 = vmatprep.subr.bf16.mxu0 0
    %2086 = vmatpush2.bf16.msra.mxu0 0
    %2087 = vmatprep.subr.bf16.mxu0 0
    %2088 = vmatpush2.bf16.msra.mxu0 0
    %2089 = vmatprep.subr.bf16.mxu0 0
    %2090 = vmatpush2.bf16.msra.mxu0 0
    %2091 = vmatprep.subr.bf16.mxu0 0
    %2092 = vmatpush2.bf16.msra.mxu0 0
    %2093 = vmatprep.subr.bf16.mxu0 0
    %2094 = vmatpush2.bf16.msra.mxu0 0
    %2095 = vmatprep.subr.bf16.mxu0 0
    %2096 = vmatpush2.bf16.msra.mxu0 0
    %2097 = vmatprep.mubr.bf16.mxu0 0
    %2098 = vmatmul.mubr.bf16.gmra.mxu0 %v1865
    %v2099 = vpop.f32.mrf.mxu0
    %v2100 = vadd.f32 %v1901, %v2099
    %v2101 = vpop.f32.mrf.mxu0
    %v2102 = vadd.f32 %v1902, %v2101
    %v2103 = vpop.f32.mrf.mxu0
    %v2104 = vpop.f32.mrf.mxu0
    %2105 = vdwg.mxu0
    %2106 = vmatprep.subr.bf16.mxu0 %v2032
    %2107 = vmatpush1.bf16.msra.mxu0 %v2031
    %2108 = vmatprep.subr.bf16.mxu0 %v2028
    %2109 = vmatpush1.bf16.msra.mxu0 %v2027
    %2110 = vmatprep.subr.bf16.mxu0 %v2024
    %2111 = vmatpush1.bf16.msra.mxu0 %v2023
    %2112 = vmatprep.subr.bf16.mxu0 %v2020
    %2113 = vmatpush1.bf16.msra.mxu0 %v2019
    %2114 = vmatprep.subr.bf16.mxu0 %v2016
    %2115 = vmatpush1.bf16.msra.mxu0 %v2015
    %2116 = vmatprep.subr.bf16.mxu0 %v2012
    %2117 = vmatpush1.bf16.msra.mxu0 %v2011
    %2118 = vmatprep.subr.bf16.mxu0 %v2008
    %2119 = vmatpush1.bf16.msra.mxu0 %v2007
    %2120 = vmatprep.subr.bf16.mxu0 %v2004
    %2121 = vmatpush1.bf16.msra.mxu0 %v2003
    %2122 = vmatprep.subr.bf16.mxu0 0
    %2123 = vmatpush2.bf16.msra.mxu0 0
    %2124 = vmatprep.subr.bf16.mxu0 0
    %2125 = vmatpush2.bf16.msra.mxu0 0
    %2126 = vmatprep.subr.bf16.mxu0 0
    %2127 = vmatpush2.bf16.msra.mxu0 0
    %2128 = vmatprep.subr.bf16.mxu0 0
    %2129 = vmatpush2.bf16.msra.mxu0 0
    %2130 = vmatprep.subr.bf16.mxu0 0
    %2131 = vmatpush2.bf16.msra.mxu0 0
    %2132 = vmatprep.subr.bf16.mxu0 0
    %2133 = vmatpush2.bf16.msra.mxu0 0
    %2134 = vmatprep.subr.bf16.mxu0 0
    %2135 = vmatpush2.bf16.msra.mxu0 0
    %2136 = vmatprep.subr.bf16.mxu0 0
    %2137 = vmatpush2.bf16.msra.mxu0 0
    %2138 = vmatprep.mubr.bf16.mxu0 0
    %2139 = vmatmul.mubr.bf16.gmra.mxu0 %v1865
    %v2140 = vpop.f32.mrf.mxu0
    %v2141 = vadd.f32 %v1903, %v2140
    %v2142 = vpop.f32.mrf.mxu0
    %v2143 = vadd.f32 %v1904, %v2142
    %v2144 = vpop.f32.mrf.mxu0
    %v2145 = vpop.f32.mrf.mxu0
    %2146 = vdwg.mxu0
    %v2147 = vxor.u32 %v2141, 2147483648
    %v2148 = vmul.f32 %v2147, 1.442695
    %v2149 = vpow.pop %v2148
    %v2150 = vadd.f32 %v2149, 1.0
    %v2151 = vrcp.pop %v2150
    %v2152 = vmul.f32 1.0, %v2151
    %v2153 = vmul.f32 %v1856, %v2152
    %v2154 = vxor.u32 %v2100, 2147483648
    %v2155 = vmul.f32 %v2154, 1.442695
    %v2156 = vpow.pop %v2155
    %v2157 = vadd.f32 %v2156, 1.0
    %v2158 = vrcp.pop %v2157
    %v2159 = vmul.f32 1.0, %v2158
    %v2160 = vtanh.pop %v2102
    %v2161 = vmul.f32 %v2159, %v2160
    %v2162 = vadd.f32 %v2153, %v2161
    %v2163 = vtanh.pop %v2162
    %v2164 = vxor.u32 %v2143, 2147483648
    %v2165 = vmul.f32 %v2164, 1.442695
    %v2166 = vpow.pop %v2165
    %v2167 = vadd.f32 %v2166, 1.0
    %v2168 = vrcp.pop %v2167
    %v2169 = vmul.f32 1.0, %v2168
    %v2170 = vmul.f32 %v2163, %v2169
    %v2171 = vpack.c.bf16 %v2170, %v2170
    %s2172 = scalar_lea.vmem [#allocation4], 24
    %2173 = vst [vmem:[%s2172] sm:$0xf] %v2171
    %v2174 = vld [vmem:[%s3] sm:$0xff]
    %v2175 = vld [vmem:[%s3 + $0x8] sm:$0xff]
    %v2176 = vld [vmem:[%s3 + $0x10] sm:$0xff]
    %v2177 = vld [vmem:[%s3 + $0x18] sm:$0xff]
    %v2178 = vld [vmem:[%s3 + $0x20] sm:$0xff]
    %v2179 = vld [vmem:[%s3 + $0x28] sm:$0xff]
    %v2180 = vld [vmem:[%s3 + $0x30] sm:$0xff]
    %v2181 = vld [vmem:[%s3 + $0x38] sm:$0xff]
    %v2182 = vld [vmem:[%s3 + $0x40] sm:$0xff]
    %v2183 = vld [vmem:[%s3 + $0x48] sm:$0xff]
    %v2184 = vld [vmem:[%s3 + $0x50] sm:$0xff]
    %v2185 = vld [vmem:[%s3 + $0x58] sm:$0xff]
    %v2186 = vld [vmem:[%s3 + $0x60] sm:$0xff]
    %v2187 = vld [vmem:[%s3 + $0x68] sm:$0xff]
    %v2188 = vld [vmem:[%s3 + $0x70] sm:$0xff]
    %v2189 = vld [vmem:[%s3 + $0x78] sm:$0xff]
    %v2190 = vld [vmem:[%s3 + $0x80] sm:$0xff]
    %v2191 = vld [vmem:[%s3 + $0x88] sm:$0xff]
    %v2192 = vld [vmem:[%s3 + $0x90] sm:$0xff]
    %v2193 = vld [vmem:[%s3 + $0x98] sm:$0xff]
    %v2194 = vld [vmem:[%s3 + $0xa0] sm:$0xff]
    %v2195 = vld [vmem:[%s3 + $0xa8] sm:$0xff]
    %v2196 = vld [vmem:[%s3 + $0xb0] sm:$0xff]
    %v2197 = vld [vmem:[%s3 + $0xb8] sm:$0xff]
    %v2198 = vld [vmem:[%s3 + $0xc0] sm:$0xff]
    %v2199 = vld [vmem:[%s3 + $0xc8] sm:$0xff]
    %v2200 = vld [vmem:[%s3 + $0xd0] sm:$0xff]
    %v2201 = vld [vmem:[%s3 + $0xd8] sm:$0xff]
    %v2202 = vld [vmem:[%s3 + $0xe0] sm:$0xff]
    %v2203 = vld [vmem:[%s3 + $0xe8] sm:$0xff]
    %v2204 = vld [vmem:[%s3 + $0xf0] sm:$0xff]
    %v2205 = vld [vmem:[%s3 + $0xf8] sm:$0xff]
    %s2206 = scalar_lea.vmem %s0, 224
    %v2207 = vld [vmem:[%s2206] sm:$0xff]
    %v2208 = vld [vmem:[%s2206 + $0x8] sm:$0xff]
    %v2209 = vld [vmem:[%s2206 + $0x10] sm:$0xff]
    %v2210 = vld [vmem:[%s2206 + $0x18] sm:$0xff]
    %v2243 = vunpack.c.l.b16 %v2174
    %v2244 = vunpack.c.h.b16 %v2174
    %v2245 = vunpack.c.l.b16 %v2175
    %v2246 = vunpack.c.h.b16 %v2175
    %v2247 = vunpack.c.l.b16 %v2176
    %v2248 = vunpack.c.h.b16 %v2176
    %v2249 = vunpack.c.l.b16 %v2177
    %v2250 = vunpack.c.h.b16 %v2177
    %v2251 = vunpack.c.l.b16 %v2178
    %v2252 = vunpack.c.h.b16 %v2178
    %v2253 = vunpack.c.l.b16 %v2179
    %v2254 = vunpack.c.h.b16 %v2179
    %v2255 = vunpack.c.l.b16 %v2180
    %v2256 = vunpack.c.h.b16 %v2180
    %v2257 = vunpack.c.l.b16 %v2181
    %v2258 = vunpack.c.h.b16 %v2181
    %v2259 = vunpack.c.l.b16 %v2182
    %v2260 = vunpack.c.h.b16 %v2182
    %v2261 = vunpack.c.l.b16 %v2183
    %v2262 = vunpack.c.h.b16 %v2183
    %v2263 = vunpack.c.l.b16 %v2184
    %v2264 = vunpack.c.h.b16 %v2184
    %v2265 = vunpack.c.l.b16 %v2185
    %v2266 = vunpack.c.h.b16 %v2185
    %v2267 = vunpack.c.l.b16 %v2186
    %v2268 = vunpack.c.h.b16 %v2186
    %v2269 = vunpack.c.l.b16 %v2187
    %v2270 = vunpack.c.h.b16 %v2187
    %v2271 = vunpack.c.l.b16 %v2188
    %v2272 = vunpack.c.h.b16 %v2188
    %v2273 = vunpack.c.l.b16 %v2189
    %v2274 = vunpack.c.h.b16 %v2189
    %v2275 = vunpack.c.l.b16 %v2190
    %v2276 = vunpack.c.h.b16 %v2190
    %v2277 = vunpack.c.l.b16 %v2191
    %v2278 = vunpack.c.h.b16 %v2191
    %v2279 = vunpack.c.l.b16 %v2192
    %v2280 = vunpack.c.h.b16 %v2192
    %v2281 = vunpack.c.l.b16 %v2193
    %v2282 = vunpack.c.h.b16 %v2193
    %v2283 = vunpack.c.l.b16 %v2194
    %v2284 = vunpack.c.h.b16 %v2194
    %v2285 = vunpack.c.l.b16 %v2195
    %v2286 = vunpack.c.h.b16 %v2195
    %v2287 = vunpack.c.l.b16 %v2196
    %v2288 = vunpack.c.h.b16 %v2196
    %v2289 = vunpack.c.l.b16 %v2197
    %v2290 = vunpack.c.h.b16 %v2197
    %v2291 = vunpack.c.l.b16 %v2198
    %v2292 = vunpack.c.h.b16 %v2198
    %v2293 = vunpack.c.l.b16 %v2199
    %v2294 = vunpack.c.h.b16 %v2199
    %v2295 = vunpack.c.l.b16 %v2200
    %v2296 = vunpack.c.h.b16 %v2200
    %v2297 = vunpack.c.l.b16 %v2201
    %v2298 = vunpack.c.h.b16 %v2201
    %v2299 = vunpack.c.l.b16 %v2202
    %v2300 = vunpack.c.h.b16 %v2202
    %v2301 = vunpack.c.l.b16 %v2203
    %v2302 = vunpack.c.h.b16 %v2203
    %v2303 = vunpack.c.l.b16 %v2204
    %v2304 = vunpack.c.h.b16 %v2204
    %v2305 = vunpack.c.l.b16 %v2205
    %v2306 = vunpack.c.h.b16 %v2205
    %v2307 = vpack.c.b16 %v2247, %v2243
    %v2308 = vpack.c.b16 %v2248, %v2244
    %v2309 = vpack.c.b16 %v2249, %v2245
    %v2310 = vpack.c.b16 %v2250, %v2246
    %v2311 = vpack.c.b16 %v2255, %v2251
    %v2312 = vpack.c.b16 %v2256, %v2252
    %v2313 = vpack.c.b16 %v2257, %v2253
    %v2314 = vpack.c.b16 %v2258, %v2254
    %v2315 = vpack.c.b16 %v2263, %v2259
    %v2316 = vpack.c.b16 %v2264, %v2260
    %v2317 = vpack.c.b16 %v2265, %v2261
    %v2318 = vpack.c.b16 %v2266, %v2262
    %v2319 = vpack.c.b16 %v2271, %v2267
    %v2320 = vpack.c.b16 %v2272, %v2268
    %v2321 = vpack.c.b16 %v2273, %v2269
    %v2322 = vpack.c.b16 %v2274, %v2270
    %v2323 = vpack.c.b16 %v2279, %v2275
    %v2324 = vpack.c.b16 %v2280, %v2276
    %v2325 = vpack.c.b16 %v2281, %v2277
    %v2326 = vpack.c.b16 %v2282, %v2278
    %v2327 = vpack.c.b16 %v2287, %v2283
    %v2328 = vpack.c.b16 %v2288, %v2284
    %v2329 = vpack.c.b16 %v2289, %v2285
    %v2330 = vpack.c.b16 %v2290, %v2286
    %v2331 = vpack.c.b16 %v2295, %v2291
    %v2332 = vpack.c.b16 %v2296, %v2292
    %v2333 = vpack.c.b16 %v2297, %v2293
    %v2334 = vpack.c.b16 %v2298, %v2294
    %v2335 = vpack.c.b16 %v2303, %v2299
    %v2336 = vpack.c.b16 %v2304, %v2300
    %v2337 = vpack.c.b16 %v2305, %v2301
    %v2338 = vpack.c.b16 %v2306, %v2302
    %2371 = vmatprep.subr.bf16.mxu0 %v2336
    %2372 = vmatpush1.bf16.msra.mxu0 %v2335
    %2373 = vmatprep.subr.bf16.mxu0 %v2332
    %2374 = vmatpush1.bf16.msra.mxu0 %v2331
    %2375 = vmatprep.subr.bf16.mxu0 %v2328
    %2376 = vmatpush1.bf16.msra.mxu0 %v2327
    %2377 = vmatprep.subr.bf16.mxu0 %v2324
    %2378 = vmatpush1.bf16.msra.mxu0 %v2323
    %2379 = vmatprep.subr.bf16.mxu0 %v2320
    %2380 = vmatpush1.bf16.msra.mxu0 %v2319
    %2381 = vmatprep.subr.bf16.mxu0 %v2316
    %2382 = vmatpush1.bf16.msra.mxu0 %v2315
    %2383 = vmatprep.subr.bf16.mxu0 %v2312
    %2384 = vmatpush1.bf16.msra.mxu0 %v2311
    %2385 = vmatprep.subr.bf16.mxu0 %v2308
    %2386 = vmatpush1.bf16.msra.mxu0 %v2307
    %2387 = vmatprep.subr.bf16.mxu0 0
    %2388 = vmatpush2.bf16.msra.mxu0 0
    %2389 = vmatprep.subr.bf16.mxu0 0
    %2390 = vmatpush2.bf16.msra.mxu0 0
    %2391 = vmatprep.subr.bf16.mxu0 0
    %2392 = vmatpush2.bf16.msra.mxu0 0
    %2393 = vmatprep.subr.bf16.mxu0 0
    %2394 = vmatpush2.bf16.msra.mxu0 0
    %2395 = vmatprep.subr.bf16.mxu0 0
    %2396 = vmatpush2.bf16.msra.mxu0 0
    %2397 = vmatprep.subr.bf16.mxu0 0
    %2398 = vmatpush2.bf16.msra.mxu0 0
    %2399 = vmatprep.subr.bf16.mxu0 0
    %2400 = vmatpush2.bf16.msra.mxu0 0
    %2401 = vmatprep.subr.bf16.mxu0 0
    %2402 = vmatpush2.bf16.msra.mxu0 0
    %2403 = vmatprep.mubr.bf16.mxu0 0
    %2404 = vmatmul.mubr.bf16.gmra.mxu0 %v2171
    %v2405 = vpop.f32.mrf.mxu0
    %v2406 = vadd.f32 %v2207, %v2405
    %v2407 = vpop.f32.mrf.mxu0
    %v2408 = vadd.f32 %v2208, %v2407
    %v2409 = vpop.f32.mrf.mxu0
    %v2410 = vpop.f32.mrf.mxu0
    %2411 = vdwg.mxu0
    %2412 = vmatprep.subr.bf16.mxu0 %v2338
    %2413 = vmatpush1.bf16.msra.mxu0 %v2337
    %2414 = vmatprep.subr.bf16.mxu0 %v2334
    %2415 = vmatpush1.bf16.msra.mxu0 %v2333
    %2416 = vmatprep.subr.bf16.mxu0 %v2330
    %2417 = vmatpush1.bf16.msra.mxu0 %v2329
    %2418 = vmatprep.subr.bf16.mxu0 %v2326
    %2419 = vmatpush1.bf16.msra.mxu0 %v2325
    %2420 = vmatprep.subr.bf16.mxu0 %v2322
    %2421 = vmatpush1.bf16.msra.mxu0 %v2321
    %2422 = vmatprep.subr.bf16.mxu0 %v2318
    %2423 = vmatpush1.bf16.msra.mxu0 %v2317
    %2424 = vmatprep.subr.bf16.mxu0 %v2314
    %2425 = vmatpush1.bf16.msra.mxu0 %v2313
    %2426 = vmatprep.subr.bf16.mxu0 %v2310
    %2427 = vmatpush1.bf16.msra.mxu0 %v2309
    %2428 = vmatprep.subr.bf16.mxu0 0
    %2429 = vmatpush2.bf16.msra.mxu0 0
    %2430 = vmatprep.subr.bf16.mxu0 0
    %2431 = vmatpush2.bf16.msra.mxu0 0
    %2432 = vmatprep.subr.bf16.mxu0 0
    %2433 = vmatpush2.bf16.msra.mxu0 0
    %2434 = vmatprep.subr.bf16.mxu0 0
    %2435 = vmatpush2.bf16.msra.mxu0 0
    %2436 = vmatprep.subr.bf16.mxu0 0
    %2437 = vmatpush2.bf16.msra.mxu0 0
    %2438 = vmatprep.subr.bf16.mxu0 0
    %2439 = vmatpush2.bf16.msra.mxu0 0
    %2440 = vmatprep.subr.bf16.mxu0 0
    %2441 = vmatpush2.bf16.msra.mxu0 0
    %2442 = vmatprep.subr.bf16.mxu0 0
    %2443 = vmatpush2.bf16.msra.mxu0 0
    %2444 = vmatprep.mubr.bf16.mxu0 0
    %2445 = vmatmul.mubr.bf16.gmra.mxu0 %v2171
    %v2446 = vpop.f32.mrf.mxu0
    %v2447 = vadd.f32 %v2209, %v2446
    %v2448 = vpop.f32.mrf.mxu0
    %v2449 = vadd.f32 %v2210, %v2448
    %v2450 = vpop.f32.mrf.mxu0
    %v2451 = vpop.f32.mrf.mxu0
    %2452 = vdwg.mxu0
    %v2453 = vxor.u32 %v2447, 2147483648
    %v2454 = vmul.f32 %v2453, 1.442695
    %v2455 = vpow.pop %v2454
    %v2456 = vadd.f32 %v2455, 1.0
    %v2457 = vrcp.pop %v2456
    %v2458 = vmul.f32 1.0, %v2457
    %v2459 = vmul.f32 %v2162, %v2458
    %v2460 = vxor.u32 %v2406, 2147483648
    %v2461 = vmul.f32 %v2460, 1.442695
    %v2462 = vpow.pop %v2461
    %v2463 = vadd.f32 %v2462, 1.0
    %v2464 = vrcp.pop %v2463
    %v2465 = vmul.f32 1.0, %v2464
    %v2466 = vtanh.pop %v2408
    %v2467 = vmul.f32 %v2465, %v2466
    %v2468 = vadd.f32 %v2459, %v2467
    %v2469 = vtanh.pop %v2468
    %v2470 = vxor.u32 %v2449, 2147483648
    %v2471 = vmul.f32 %v2470, 1.442695
    %v2472 = vpow.pop %v2471
    %v2473 = vadd.f32 %v2472, 1.0
    %v2474 = vrcp.pop %v2473
    %v2475 = vmul.f32 1.0, %v2474
    %v2476 = vmul.f32 %v2469, %v2475
    %v2477 = vpack.c.bf16 %v2476, %v2476
    %s2478 = scalar_lea.vmem [#allocation4], 28
    %2479 = vst [vmem:[%s2478] sm:$0xf] %v2477
    %2480 = vst [vmem:[#allocation2] sm:$0xff] %v2476
    %2481 = vst [vmem:[#allocation3] sm:$0xff] %v2468
    // Predicated region
    $region22: #{lstm_forward_sequence.1} parent=1 // pred_check
      %p2482 = pneg %p23
    $region23: #{lstm_forward_sequence.1} parent=1 // pred_check_branch
      %2484 = sbr.rel (%p2482) target = $region25
    $region24: #{lstm_forward_sequence.1} parent=1 // pred_region
      %2485 = vst [vmem:[#allocation6] sm:$0xff] %v2476
      %2486 = vst [vmem:[#allocation8] sm:$0xff] %v2468
    $region25: #{lstm_forward_sequence.1} parent=1 // pred_fallthru
      _
    // Predicated region
    $region26: #{lstm_forward_sequence.1} parent=1 // pred_check
      _
    $region27: #{lstm_forward_sequence.1} parent=1 // pred_check_branch
      %2488 = sbr.rel (0) target = $region29
    $region28: #{lstm_forward_sequence.1} parent=1 // pred_region
      %s2490 = ssub.s32 512, 512
      %2491 = vsyncadd [#allocation5], %s2490
      %s2492 = sshll.u32 [#allocation4], 4
      %s2493 = int_to_ptr.vmem [resolvable:$true] %s2492
      %2498 = dma.vmem_to_hbm [thread:$0]  %s2493, 512, %s4, [#allocation5], 64, 64, 4
    $region29: #{lstm_forward_sequence.1} parent=1 // pred_fallthru
      _
    // Predicated region
    $region30: #{lstm_forward_sequence.1} parent=1 // pred_check
      _
    $region31: #{lstm_forward_sequence.1} parent=1 // pred_check_branch
      %2500 = sbr.rel (0) target = $region33
    $region32: #{lstm_forward_sequence.1} parent=1 // pred_region
      %s2502 = ssub.s32 128, 128
      %2503 = vsyncadd [#allocation7], %s2502
      %s2505 = sshll.u32 [#allocation6], 4
      %s2506 = int_to_ptr.vmem [resolvable:$true] %s2505
      %2508 = dma.vmem_to_hbm [thread:$0]  %s2506, 128, %s5, [#allocation7]
    $region33: #{lstm_forward_sequence.1} parent=1 // pred_fallthru
      _
    // Predicated region
    $region34: #{lstm_forward_sequence.1} parent=1 // pred_check
      _
    $region35: #{lstm_forward_sequence.1} parent=1 // pred_check_branch
      %2510 = sbr.rel (0) target = $region37
    $region36: #{lstm_forward_sequence.1} parent=1 // pred_region
      %s2512 = ssub.s32 128, 128
      %2513 = vsyncadd [#allocation7], %s2512
      %s2515 = sshll.u32 [#allocation8], 4
      %s2516 = int_to_ptr.vmem [resolvable:$true] %s2515
      %2518 = dma.vmem_to_hbm [thread:$0]  %s2516, 128, %s6, [#allocation7]
    $region37: #{lstm_forward_sequence.1} parent=1 // pred_fallthru
      _
    // Predicated region
    $region38: #{lstm_forward_sequence.1} parent=1 // pred_check
      _
    $region39: #{lstm_forward_sequence.1} parent=1 // pred_check_branch
      %2520 = sbr.rel (0) target = $region41
    $region40: #{lstm_forward_sequence.1} parent=1 // pred_region
      %2521 = dma.done [#allocation5], 512
    $region41: #{lstm_forward_sequence.1} parent=1 // pred_fallthru
      _
    // Predicated region
    $region42: #{lstm_forward_sequence.1} parent=1 // pred_check
      _
    $region43: #{lstm_forward_sequence.1} parent=1 // pred_check_branch
      %2523 = sbr.rel (0) target = $region45
    $region44: #{lstm_forward_sequence.1} parent=1 // pred_region
      %2524 = dma.done [#allocation7], 128
    $region45: #{lstm_forward_sequence.1} parent=1 // pred_fallthru
      _
    // Predicated region
    $region46: #{lstm_forward_sequence.1} parent=1 // pred_check
      _
    $region47: #{lstm_forward_sequence.1} parent=1 // pred_check_branch
      %2526 = sbr.rel (0) target = $region49
    $region48: #{lstm_forward_sequence.1} parent=1 // pred_region
      %2527 = dma.done [#allocation7], 128
    $region49: #{lstm_forward_sequence.1} parent=1 // pred_fallthru
      _
    %2528 = vsyncpa [#allocation5], 1
    %2529 = vsyncpa [#allocation7], 1

</llo_original>
